<compile_context>
chip_gen: v7x
topology: tpu7x:2x2x1
jax: 0.10.0
libtpu: 0.0.40
codegen_flags: <defaults>
</compile_context>

<pallas_src>
import jax
import jax.numpy as jnp
from jax.experimental import pallas as pl
from jax.experimental.pallas import tpu as pltpu

NEG_SLOPE = 0.01                                     # nn.LeakyReLU default
LAYER_DIMS = [17, 64, 64, 64, 32, 32, 32, 16, 2]     # 8 linear layers
N_LAYERS = len(LAYER_DIMS) - 1                       # 8
N_MID = N_LAYERS - 2                                 # 6 packed 64x64 bf16 mid layers
F_IN = LAYER_DIMS[0]                                 # 17
F_IN_PAD = 32                                        # feature sublane pad (bf16-tile friendly)
H_PAD = 64                                           # widest hidden width
OUT_PAD = 8                                          # final-layer output rows (2 -> 8)
MAX_TB = 512                                         # max batch tile (lanes)


def _leaky_relu(h):
    return jnp.where(h > 0, h, NEG_SLOPE * h)


def combined_ard_kernel(feat_ref, x_ref, w0_ref, w_mid_ref, w_last_ref,
                        b_hid_ref, b_last_ref, out_ref):
    """Feature-major layout: feat_ref (32, TB), x_ref / out_ref (1, TB)."""
    # Layer 0 (GaussianPriorLayer, 17 -> 64): bf16 at the MXU, f32 accumulate.
    h = jnp.dot(w0_ref[...], feat_ref[...].astype(jnp.bfloat16),
                preferred_element_type=jnp.float32)            # (64, TB) f32
    h = _leaky_relu(h + b_hid_ref[0])                          # bias + act in f32 (VPU)

    # Layers 1..6 (64/64/32/32/32/16 wide, zero padded to 64x64 bf16).
    for li in range(N_MID):
        h = jnp.dot(w_mid_ref[li], h.astype(jnp.bfloat16),
                    preferred_element_type=jnp.float32)        # (64, TB) f32
        h = _leaky_relu(h + b_hid_ref[li + 1])

    # Final (16 -> 2) layer kept in f32: A and B feed a pow.
    h = jnp.dot(w_last_ref[...], h, preferred_element_type=jnp.float32)   # (8, TB)
    h = h + b_last_ref[...]

    A = h[0:1, :]                                              # (1, TB)
    Bexp = jnp.maximum(h[1:2, :], 1e-10)                       # (1, TB)
    # NOTE: x <= 0 with a fractional exponent yields NaN/Inf, same as torch.
    out_ref[...] = A * x_ref[...] ** Bexp                      # (1, TB) lane-dense store


@jax.jit
def combined_forward(features, x, w0, w_mid, w_last, b_hid, b_last):
    """features: (B, 17) f32; x: (B,) f32 -> (B,) f32."""
    B = features.shape[0]
    TB = min(MAX_TB, max(128, ((B + 127) // 128) * 128))       # adaptive batch tile
    n_blocks = pl.cdiv(B, TB)
    B_pad = n_blocks * TB

    # Transposed + padded inputs (done in the wrapper: pure layout plumbing).
    feat_t = jnp.zeros((F_IN_PAD, B_pad), jnp.float32)
    feat_t = feat_t.at[:F_IN, :B].set(features.T)
    x_row = jnp.ones((1, B_pad), jnp.float32).at[0, :B].set(x)  # pad with 1 (pow-safe)

    out = pl.pallas_call(
        combined_ard_kernel,
        out_shape=jax.ShapeDtypeStruct((1, B_pad), jnp.float32),
        grid=(n_blocks,),
        in_specs=[
            pl.BlockSpec((F_IN_PAD, TB), lambda i: (0, i)),                # features^T
            pl.BlockSpec((1, TB), lambda i: (0, i)),                       # x
            pl.BlockSpec((H_PAD, F_IN_PAD), lambda i: (0, 0)),             # w0 bf16 (resident)
            pl.BlockSpec((N_MID, H_PAD, H_PAD), lambda i: (0, 0, 0)),      # mid weights (resident)
            pl.BlockSpec((OUT_PAD, H_PAD), lambda i: (0, 0)),              # last-layer f32 W (resident)
            pl.BlockSpec((N_LAYERS - 1, H_PAD, 1), lambda i: (0, 0, 0)),   # hidden biases (resident)
            pl.BlockSpec((OUT_PAD, 1), lambda i: (0, 0)),                  # last bias (resident)
        ],
        out_specs=pl.BlockSpec((1, TB), lambda i: (0, i)),
        compiler_params=pltpu.CompilerParams(
            dimension_semantics=("parallel",)),
    )(feat_t, x_row, w0, w_mid, w_last, b_hid, b_last)
    return out[0, :B]


def init_params(key, alpha):
    """Deterministic parameters mirroring CombinedModelwithARD.__init__.

    Weights are stored (in_features, out_features) so the forward is h @ W + b
    (the transpose of torch's nn.Linear (out,in) storage).
    """
    params = []
    # GaussianPriorLayer(17, 64, alpha): weights_mean = 0, bias = 0,
    # effective weights = sqrt(alpha_i)[:, None] * randn(17, 64)   (frozen sample)
    key, k_noise = jax.random.split(key)
    std = jnp.sqrt(alpha)[:, None]                                   # (17, 1)
    w0 = std * jax.random.normal(k_noise, (LAYER_DIMS[0], LAYER_DIMS[1]), jnp.float32)
    b0 = jnp.zeros((LAYER_DIMS[1],), jnp.float32)
    params.append((w0, b0))
    # 7 plain nn.Linear layers (kaiming-uniform-ish deterministic init)
    for i in range(1, N_LAYERS):
        fan_in, fan_out = LAYER_DIMS[i], LAYER_DIMS[i + 1]
        key, kw, kb = jax.random.split(key, 3)
        bound = 1.0 / jnp.sqrt(float(fan_in))
        w = jax.random.uniform(kw, (fan_in, fan_out), jnp.float32, -bound, bound)
        b = jax.random.uniform(kb, (fan_out,), jnp.float32, -bound, bound)
        params.append((w, b))
    return params


def pack_params(params):
    """Pack into the kernel's padded, transposed, partially-bf16 operands."""
    # Layer 0: (17, 64) stored -> W^T zero padded to (64, 32), bf16.
    w0_src, _ = params[0]
    w0 = jnp.zeros((H_PAD, F_IN_PAD), jnp.float32)
    w0 = w0.at[: w0_src.shape[1], : w0_src.shape[0]].set(w0_src.T).astype(jnp.bfloat16)

    # Layers 1..6: W^T zero padded to (64, 64), bf16.
    w_mid = jnp.zeros((N_MID, H_PAD, H_PAD), jnp.float32)
    for li in range(N_MID):
        w, _ = params[li + 1]                              # (in, out)
        w_mid = w_mid.at[li, : w.shape[1], : w.shape[0]].set(w.T)
    w_mid = w_mid.astype(jnp.bfloat16)

    # Final layer: (16, 2) stored -> W^T zero padded to (8, 64), f32.
    w_last_src, b_last_src = params[N_LAYERS - 1]
    w_last = jnp.zeros((OUT_PAD, H_PAD), jnp.float32)
    w_last = w_last.at[: w_last_src.shape[1], : w_last_src.shape[0]].set(w_last_src.T)

    # Biases for layers 0..6, zero padded to 64.
    b_hid = jnp.zeros((N_LAYERS - 1, H_PAD, 1), jnp.float32)
    for li in range(N_LAYERS - 1):
        _, b = params[li]
        b_hid = b_hid.at[li, : b.shape[0], 0].set(b)

    b_last = jnp.zeros((OUT_PAD, 1), jnp.float32)
    b_last = b_last.at[: b_last_src.shape[0], 0].set(b_last_src)
    return w0, w_mid, w_last, b_hid, b_last


def reference_forward_f32(features, x, params):
    """Pure-f32 reference (PyTorch semantics with the frozen weight sample)."""
    h = features
    for li, (w, b) in enumerate(params):
        h = h @ w + b
        if li < N_LAYERS - 1:
            h = jnp.where(h > 0, h, NEG_SLOPE * h)
    A = h[:, 0]
    Bexp = jnp.maximum(h[:, 1], 1e-10)
    return A * x ** Bexp


def reference_forward_mixed(features, x, params):
    """Reference with the same bf16-at-the-MXU placement the kernel uses."""
    h = features
    for li, (w, b) in enumerate(params):
        if li < N_LAYERS - 1:
            hq = h.astype(jnp.bfloat16).astype(jnp.float32)
            wq = w.astype(jnp.bfloat16).astype(jnp.float32)
            h = hq @ wq + b
            h = jnp.where(h > 0, h, NEG_SLOPE * h)
        else:
            h = h @ w + b
    A = h[:, 0]
    Bexp = jnp.maximum(h[:, 1], 1e-10)
    return A * x ** Bexp


if __name__ == "__main__":
    key = jax.random.PRNGKey(0)
    batch = 64                                # small example batch (1 grid step of 128 lanes)

    # alpha_i per input feature (17 of them), deterministic
    alpha = jnp.linspace(0.1, 1.0, F_IN).astype(jnp.float32)

    key, k_feat, k_x, k_par = jax.random.split(key, 4)
    features = jax.random.normal(k_feat, (batch, F_IN), jnp.float32)
    # x positive so x ** B (fractional exponent) is well defined, same as torch usage
    x = jax.random.uniform(k_x, (batch,), jnp.float32, 0.1, 2.0)

    params = init_params(k_par, alpha)
    w0, w_mid, w_last, b_hid, b_last = pack_params(params)

    out = combined_forward(features, x, w0, w_mid, w_last, b_hid, b_last)
    out = jax.block_until_ready(out)

    ref_mixed = reference_forward_mixed(features, x, params)
    ref_f32 = reference_forward_f32(features, x, params)

    assert out.shape == (batch,)
    # Tight check vs. a reference using the same bf16-MXU placement as the kernel.
    assert jnp.allclose(out, ref_mixed, atol=5e-3, rtol=5e-3), float(
        jnp.max(jnp.abs(out - ref_mixed)))
    # Loose sanity check vs. pure-f32 math (bf16 hidden layers add ~1e-2 abs error).
    assert jnp.allclose(out, ref_f32, atol=1e-1, rtol=1e-1), float(
        jnp.max(jnp.abs(out - ref_f32)))

    print("KERNEL_OK")
</pallas_src>

<mosaic_0001>
module attributes {stable_mosaic.version = 11 : i64} {
  func.func @combined_ard_kernel(%arg0: i32, %arg1: memref<32x128xf32, #tpu.memory_space<vmem>>, %arg2: memref<1x128xf32, #tpu.memory_space<vmem>>, %arg3: memref<64x32xbf16, #tpu.memory_space<vmem>>, %arg4: memref<6x64x64xbf16, #tpu.memory_space<vmem>>, %arg5: memref<8x64xf32, #tpu.memory_space<vmem>>, %arg6: memref<7x64x1xf32, #tpu.memory_space<vmem>>, %arg7: memref<8x1xf32, #tpu.memory_space<vmem>>, %arg8: memref<1x128xf32, #tpu.memory_space<vmem>>) attributes {dimension_semantics = [#tpu.dimension_semantics<parallel>], iteration_bounds = array<i64: 1>, scalar_prefetch = 0 : i64, scratch_operands = 0 : i64, tpu.core_type = #tpu.core_type<tc>, window_params = [{transform_indices = @transform_0, window_bounds = array<i64: 32, 128>}, {transform_indices = @transform_1, window_bounds = array<i64: 1, 128>}, {pipeline_mode = #tpu.pipeline_mode<synchronous>, transform_indices = @transform_2, window_bounds = array<i64: 64, 32>}, {pipeline_mode = #tpu.pipeline_mode<synchronous>, transform_indices = @transform_3, window_bounds = array<i64: 6, 64, 64>}, {pipeline_mode = #tpu.pipeline_mode<synchronous>, transform_indices = @transform_4, window_bounds = array<i64: 8, 64>}, {pipeline_mode = #tpu.pipeline_mode<synchronous>, transform_indices = @transform_5, window_bounds = array<i64: 7, 64, 1>}, {pipeline_mode = #tpu.pipeline_mode<synchronous>, transform_indices = @transform_6, window_bounds = array<i64: 8, 1>}, {transform_indices = @transform_7, window_bounds = array<i64: 1, 128>}]} {
    %c0 = arith.constant 0 : index
    %c0_0 = arith.constant 0 : index
    %0 = vector.load %arg3[%c0, %c0_0] : memref<64x32xbf16, #tpu.memory_space<vmem>>, vector<64x32xbf16>
    %c0_1 = arith.constant 0 : index
    %c0_2 = arith.constant 0 : index
    %1 = vector.load %arg1[%c0_1, %c0_2] : memref<32x128xf32, #tpu.memory_space<vmem>>, vector<32x128xf32>
    %2 = arith.truncf %1 : vector<32x128xf32> to vector<32x128xbf16>
    %cst = arith.constant dense<0.000000e+00> : vector<64x128xf32>
    %3 = tpu.matmul %0, %2, %cst {dimension_numbers = #tpu.dot_dimension_numbers<[1], [0], [0], [1], [0, 0, 1, 1], [], []>} : vector<64x32xbf16>, vector<32x128xbf16>, vector<64x128xf32> -> vector<64x128xf32>
    %c0_3 = arith.constant 0 : index
    %c0_4 = arith.constant 0 : index
    %c0_5 = arith.constant 0 : index
    %4 = vector.load %arg6[%c0_3, %c0_4, %c0_5] : memref<7x64x1xf32, #tpu.memory_space<vmem>>, vector<1x64x1xf32>
    %5 = vector.shape_cast %4 : vector<1x64x1xf32> to vector<64x1xf32>
    %6 = vector.broadcast %5 : vector<64x1xf32> to vector<64x128xf32>
    %7 = arith.addf %3, %6 : vector<64x128xf32>
    %cst_6 = arith.constant 0.000000e+00 : f32
    %8 = vector.broadcast %cst_6 : f32 to vector<64x128xf32>
    %9 = arith.cmpf ogt, %7, %8 : vector<64x128xf32>
    %cst_7 = arith.constant 0.00999999977 : f32
    %10 = vector.broadcast %cst_7 : f32 to vector<64x128xf32>
    %11 = arith.mulf %10, %7 : vector<64x128xf32>
    %12 = arith.select %9, %7, %11 : vector<64x128xi1>, vector<64x128xf32>
    %c0_8 = arith.constant 0 : index
    %c0_9 = arith.constant 0 : index
    %c0_10 = arith.constant 0 : index
    %13 = vector.load %arg4[%c0_8, %c0_9, %c0_10] : memref<6x64x64xbf16, #tpu.memory_space<vmem>>, vector<1x64x64xbf16>
    %14 = vector.shape_cast %13 : vector<1x64x64xbf16> to vector<64x64xbf16>
    %15 = arith.truncf %12 : vector<64x128xf32> to vector<64x128xbf16>
    %cst_11 = arith.constant dense<0.000000e+00> : vector<64x128xf32>
    %16 = tpu.matmul %14, %15, %cst_11 {dimension_numbers = #tpu.dot_dimension_numbers<[1], [0], [0], [1], [0, 0, 1, 1], [], []>} : vector<64x64xbf16>, vector<64x128xbf16>, vector<64x128xf32> -> vector<64x128xf32>
    %c1 = arith.constant 1 : index
    %c0_12 = arith.constant 0 : index
    %c0_13 = arith.constant 0 : index
    %17 = vector.load %arg6[%c1, %c0_12, %c0_13] : memref<7x64x1xf32, #tpu.memory_space<vmem>>, vector<1x64x1xf32>
    %18 = vector.shape_cast %17 : vector<1x64x1xf32> to vector<64x1xf32>
    %19 = vector.broadcast %18 : vector<64x1xf32> to vector<64x128xf32>
    %20 = arith.addf %16, %19 : vector<64x128xf32>
    %cst_14 = arith.constant 0.000000e+00 : f32
    %21 = vector.broadcast %cst_14 : f32 to vector<64x128xf32>
    %22 = arith.cmpf ogt, %20, %21 : vector<64x128xf32>
    %cst_15 = arith.constant 0.00999999977 : f32
    %23 = vector.broadcast %cst_15 : f32 to vector<64x128xf32>
    %24 = arith.mulf %23, %20 : vector<64x128xf32>
    %25 = arith.select %22, %20, %24 : vector<64x128xi1>, vector<64x128xf32>
    %c1_16 = arith.constant 1 : index
    %c0_17 = arith.constant 0 : index
    %c0_18 = arith.constant 0 : index
    %26 = vector.load %arg4[%c1_16, %c0_17, %c0_18] : memref<6x64x64xbf16, #tpu.memory_space<vmem>>, vector<1x64x64xbf16>
    %27 = vector.shape_cast %26 : vector<1x64x64xbf16> to vector<64x64xbf16>
    %28 = arith.truncf %25 : vector<64x128xf32> to vector<64x128xbf16>
    %cst_19 = arith.constant dense<0.000000e+00> : vector<64x128xf32>
    %29 = tpu.matmul %27, %28, %cst_19 {dimension_numbers = #tpu.dot_dimension_numbers<[1], [0], [0], [1], [0, 0, 1, 1], [], []>} : vector<64x64xbf16>, vector<64x128xbf16>, vector<64x128xf32> -> vector<64x128xf32>
    %c2 = arith.constant 2 : index
    %c0_20 = arith.constant 0 : index
    %c0_21 = arith.constant 0 : index
    %30 = vector.load %arg6[%c2, %c0_20, %c0_21] : memref<7x64x1xf32, #tpu.memory_space<vmem>>, vector<1x64x1xf32>
    %31 = vector.shape_cast %30 : vector<1x64x1xf32> to vector<64x1xf32>
    %32 = vector.broadcast %31 : vector<64x1xf32> to vector<64x128xf32>
    %33 = arith.addf %29, %32 : vector<64x128xf32>
    %cst_22 = arith.constant 0.000000e+00 : f32
    %34 = vector.broadcast %cst_22 : f32 to vector<64x128xf32>
    %35 = arith.cmpf ogt, %33, %34 : vector<64x128xf32>
    %cst_23 = arith.constant 0.00999999977 : f32
    %36 = vector.broadcast %cst_23 : f32 to vector<64x128xf32>
    %37 = arith.mulf %36, %33 : vector<64x128xf32>
    %38 = arith.select %35, %33, %37 : vector<64x128xi1>, vector<64x128xf32>
    %c2_24 = arith.constant 2 : index
    %c0_25 = arith.constant 0 : index
    %c0_26 = arith.constant 0 : index
    %39 = vector.load %arg4[%c2_24, %c0_25, %c0_26] : memref<6x64x64xbf16, #tpu.memory_space<vmem>>, vector<1x64x64xbf16>
    %40 = vector.shape_cast %39 : vector<1x64x64xbf16> to vector<64x64xbf16>
    %41 = arith.truncf %38 : vector<64x128xf32> to vector<64x128xbf16>
    %cst_27 = arith.constant dense<0.000000e+00> : vector<64x128xf32>
    %42 = tpu.matmul %40, %41, %cst_27 {dimension_numbers = #tpu.dot_dimension_numbers<[1], [0], [0], [1], [0, 0, 1, 1], [], []>} : vector<64x64xbf16>, vector<64x128xbf16>, vector<64x128xf32> -> vector<64x128xf32>
    %c3 = arith.constant 3 : index
    %c0_28 = arith.constant 0 : index
    %c0_29 = arith.constant 0 : index
    %43 = vector.load %arg6[%c3, %c0_28, %c0_29] : memref<7x64x1xf32, #tpu.memory_space<vmem>>, vector<1x64x1xf32>
    %44 = vector.shape_cast %43 : vector<1x64x1xf32> to vector<64x1xf32>
    %45 = vector.broadcast %44 : vector<64x1xf32> to vector<64x128xf32>
    %46 = arith.addf %42, %45 : vector<64x128xf32>
    %cst_30 = arith.constant 0.000000e+00 : f32
    %47 = vector.broadcast %cst_30 : f32 to vector<64x128xf32>
    %48 = arith.cmpf ogt, %46, %47 : vector<64x128xf32>
    %cst_31 = arith.constant 0.00999999977 : f32
    %49 = vector.broadcast %cst_31 : f32 to vector<64x128xf32>
    %50 = arith.mulf %49, %46 : vector<64x128xf32>
    %51 = arith.select %48, %46, %50 : vector<64x128xi1>, vector<64x128xf32>
    %c3_32 = arith.constant 3 : index
    %c0_33 = arith.constant 0 : index
    %c0_34 = arith.constant 0 : index
    %52 = vector.load %arg4[%c3_32, %c0_33, %c0_34] : memref<6x64x64xbf16, #tpu.memory_space<vmem>>, vector<1x64x64xbf16>
    %53 = vector.shape_cast %52 : vector<1x64x64xbf16> to vector<64x64xbf16>
    %54 = arith.truncf %51 : vector<64x128xf32> to vector<64x128xbf16>
    %cst_35 = arith.constant dense<0.000000e+00> : vector<64x128xf32>
    %55 = tpu.matmul %53, %54, %cst_35 {dimension_numbers = #tpu.dot_dimension_numbers<[1], [0], [0], [1], [0, 0, 1, 1], [], []>} : vector<64x64xbf16>, vector<64x128xbf16>, vector<64x128xf32> -> vector<64x128xf32>
    %c4 = arith.constant 4 : index
    %c0_36 = arith.constant 0 : index
    %c0_37 = arith.constant 0 : index
    %56 = vector.load %arg6[%c4, %c0_36, %c0_37] : memref<7x64x1xf32, #tpu.memory_space<vmem>>, vector<1x64x1xf32>
    %57 = vector.shape_cast %56 : vector<1x64x1xf32> to vector<64x1xf32>
    %58 = vector.broadcast %57 : vector<64x1xf32> to vector<64x128xf32>
    %59 = arith.addf %55, %58 : vector<64x128xf32>
    %cst_38 = arith.constant 0.000000e+00 : f32
    %60 = vector.broadcast %cst_38 : f32 to vector<64x128xf32>
    %61 = arith.cmpf ogt, %59, %60 : vector<64x128xf32>
    %cst_39 = arith.constant 0.00999999977 : f32
    %62 = vector.broadcast %cst_39 : f32 to vector<64x128xf32>
    %63 = arith.mulf %62, %59 : vector<64x128xf32>
    %64 = arith.select %61, %59, %63 : vector<64x128xi1>, vector<64x128xf32>
    %c4_40 = arith.constant 4 : index
    %c0_41 = arith.constant 0 : index
    %c0_42 = arith.constant 0 : index
    %65 = vector.load %arg4[%c4_40, %c0_41, %c0_42] : memref<6x64x64xbf16, #tpu.memory_space<vmem>>, vector<1x64x64xbf16>
    %66 = vector.shape_cast %65 : vector<1x64x64xbf16> to vector<64x64xbf16>
    %67 = arith.truncf %64 : vector<64x128xf32> to vector<64x128xbf16>
    %cst_43 = arith.constant dense<0.000000e+00> : vector<64x128xf32>
    %68 = tpu.matmul %66, %67, %cst_43 {dimension_numbers = #tpu.dot_dimension_numbers<[1], [0], [0], [1], [0, 0, 1, 1], [], []>} : vector<64x64xbf16>, vector<64x128xbf16>, vector<64x128xf32> -> vector<64x128xf32>
    %c5 = arith.constant 5 : index
    %c0_44 = arith.constant 0 : index
    %c0_45 = arith.constant 0 : index
    %69 = vector.load %arg6[%c5, %c0_44, %c0_45] : memref<7x64x1xf32, #tpu.memory_space<vmem>>, vector<1x64x1xf32>
    %70 = vector.shape_cast %69 : vector<1x64x1xf32> to vector<64x1xf32>
    %71 = vector.broadcast %70 : vector<64x1xf32> to vector<64x128xf32>
    %72 = arith.addf %68, %71 : vector<64x128xf32>
    %cst_46 = arith.constant 0.000000e+00 : f32
    %73 = vector.broadcast %cst_46 : f32 to vector<64x128xf32>
    %74 = arith.cmpf ogt, %72, %73 : vector<64x128xf32>
    %cst_47 = arith.constant 0.00999999977 : f32
    %75 = vector.broadcast %cst_47 : f32 to vector<64x128xf32>
    %76 = arith.mulf %75, %72 : vector<64x128xf32>
    %77 = arith.select %74, %72, %76 : vector<64x128xi1>, vector<64x128xf32>
    %c5_48 = arith.constant 5 : index
    %c0_49 = arith.constant 0 : index
    %c0_50 = arith.constant 0 : index
    %78 = vector.load %arg4[%c5_48, %c0_49, %c0_50] : memref<6x64x64xbf16, #tpu.memory_space<vmem>>, vector<1x64x64xbf16>
    %79 = vector.shape_cast %78 : vector<1x64x64xbf16> to vector<64x64xbf16>
    %80 = arith.truncf %77 : vector<64x128xf32> to vector<64x128xbf16>
    %cst_51 = arith.constant dense<0.000000e+00> : vector<64x128xf32>
    %81 = tpu.matmul %79, %80, %cst_51 {dimension_numbers = #tpu.dot_dimension_numbers<[1], [0], [0], [1], [0, 0, 1, 1], [], []>} : vector<64x64xbf16>, vector<64x128xbf16>, vector<64x128xf32> -> vector<64x128xf32>
    %c6 = arith.constant 6 : index
    %c0_52 = arith.constant 0 : index
    %c0_53 = arith.constant 0 : index
    %82 = vector.load %arg6[%c6, %c0_52, %c0_53] : memref<7x64x1xf32, #tpu.memory_space<vmem>>, vector<1x64x1xf32>
    %83 = vector.shape_cast %82 : vector<1x64x1xf32> to vector<64x1xf32>
    %84 = vector.broadcast %83 : vector<64x1xf32> to vector<64x128xf32>
    %85 = arith.addf %81, %84 : vector<64x128xf32>
    %cst_54 = arith.constant 0.000000e+00 : f32
    %86 = vector.broadcast %cst_54 : f32 to vector<64x128xf32>
    %87 = arith.cmpf ogt, %85, %86 : vector<64x128xf32>
    %cst_55 = arith.constant 0.00999999977 : f32
    %88 = vector.broadcast %cst_55 : f32 to vector<64x128xf32>
    %89 = arith.mulf %88, %85 : vector<64x128xf32>
    %90 = arith.select %87, %85, %89 : vector<64x128xi1>, vector<64x128xf32>
    %c0_56 = arith.constant 0 : index
    %c0_57 = arith.constant 0 : index
    %91 = vector.load %arg5[%c0_56, %c0_57] : memref<8x64xf32, #tpu.memory_space<vmem>>, vector<8x64xf32>
    %cst_58 = arith.constant dense<0.000000e+00> : vector<8x128xf32>
    %92 = tpu.matmul %91, %90, %cst_58 {dimension_numbers = #tpu.dot_dimension_numbers<[1], [0], [0], [1], [0, 0, 1, 1], [], []>} : vector<8x64xf32>, vector<64x128xf32>, vector<8x128xf32> -> vector<8x128xf32>
    %c0_59 = arith.constant 0 : index
    %c0_60 = arith.constant 0 : index
    %93 = vector.load %arg7[%c0_59, %c0_60] : memref<8x1xf32, #tpu.memory_space<vmem>>, vector<8x1xf32>
    %94 = vector.broadcast %93 : vector<8x1xf32> to vector<8x128xf32>
    %95 = arith.addf %92, %94 : vector<8x128xf32>
    %96 = vector.extract_strided_slice %95 {offsets = [0, 0], sizes = [1, 128], strides = [1, 1]} : vector<8x128xf32> to vector<1x128xf32>
    %97 = vector.extract_strided_slice %95 {offsets = [1, 0], sizes = [1, 128], strides = [1, 1]} : vector<8x128xf32> to vector<1x128xf32>
    %cst_61 = arith.constant 1.000000e-10 : f32
    %98 = vector.broadcast %cst_61 : f32 to vector<1x128xf32>
    %99 = arith.maximumf %97, %98 : vector<1x128xf32>
    %c0_62 = arith.constant 0 : index
    %c0_63 = arith.constant 0 : index
    %100 = vector.load %arg2[%c0_62, %c0_63] : memref<1x128xf32, #tpu.memory_space<vmem>>, vector<1x128xf32>
    %101 = math.powf %100, %99 : vector<1x128xf32>
    %102 = arith.mulf %96, %101 : vector<1x128xf32>
    %c0_64 = arith.constant 0 : index
    %c0_65 = arith.constant 0 : index
    %103 = vector.load %arg8[%c0_64, %c0_65] : memref<1x128xf32, #tpu.memory_space<vmem>>, vector<1x128xf32>
    tpu.vector_store %arg8[%c0_64, %c0_65], %102 {strides = array<i32>} : memref<1x128xf32, #tpu.memory_space<vmem>>, vector<1x128xf32>,
    return
  }
  func.func @transform_0(%arg0: i32) -> (i32, i32) {
    %c0_i32 = arith.constant 0 : i32
    %c0_i32_0 = arith.constant 0 : i32
    return %c0_i32, %arg0 : i32, i32
  }
  func.func @transform_1(%arg0: i32) -> (i32, i32) {
    %c0_i32 = arith.constant 0 : i32
    %c0_i32_0 = arith.constant 0 : i32
    return %c0_i32, %arg0 : i32, i32
  }
  func.func @transform_2(%arg0: i32) -> (i32, i32) {
    %c0_i32 = arith.constant 0 : i32
    %c0_i32_0 = arith.constant 0 : i32
    %c0_i32_1 = arith.constant 0 : i32
    return %c0_i32, %c0_i32_0 : i32, i32
  }
  func.func @transform_3(%arg0: i32) -> (i32, i32, i32) {
    %c0_i32 = arith.constant 0 : i32
    %c0_i32_0 = arith.constant 0 : i32
    %c0_i32_1 = arith.constant 0 : i32
    %c0_i32_2 = arith.constant 0 : i32
    return %c0_i32, %c0_i32_0, %c0_i32_1 : i32, i32, i32
  }
  func.func @transform_4(%arg0: i32) -> (i32, i32) {
    %c0_i32 = arith.constant 0 : i32
    %c0_i32_0 = arith.constant 0 : i32
    %c0_i32_1 = arith.constant 0 : i32
    return %c0_i32, %c0_i32_0 : i32, i32
  }
  func.func @transform_5(%arg0: i32) -> (i32, i32, i32) {
    %c0_i32 = arith.constant 0 : i32
    %c0_i32_0 = arith.constant 0 : i32
    %c0_i32_1 = arith.constant 0 : i32
    %c0_i32_2 = arith.constant 0 : i32
    return %c0_i32, %c0_i32_0, %c0_i32_1 : i32, i32, i32
  }
  func.func @transform_6(%arg0: i32) -> (i32, i32) {
    %c0_i32 = arith.constant 0 : i32
    %c0_i32_0 = arith.constant 0 : i32
    %c0_i32_1 = arith.constant 0 : i32
    return %c0_i32, %c0_i32_0 : i32, i32
  }
  func.func @transform_7(%arg0: i32) -> (i32, i32) {
    %c0_i32 = arith.constant 0 : i32
    %c0_i32_0 = arith.constant 0 : i32
    return %c0_i32, %arg0 : i32, i32
  }
}

</mosaic_0001>

<llo_original>
// kernel: combined_forward.1
$region0: #{combined_forward.1}
  #allocation0 [shape = 'u32[]', space=smem, size = 0x4, offset = 0x4, fixed_abs, tag = 'smem constant byte address 0x4 - core index']
  #allocation1 [shape = 'u32[144,128]{1,0:T(1,128)}', space=vmem, size = 0x12000, scoped, tag = 'internal scratch']
  %s0 = inlined_call_operand.vmem [shape: f32[32,128], index: 0, kind: input, shape index: {}]
  %s1 = inlined_call_operand.vmem [shape: f32[1,128], index: 1, kind: input, shape index: {}]
  %s2 = inlined_call_operand.vmem [shape: bf16[64,32], index: 2, kind: input, shape index: {}]
  %s3 = inlined_call_operand.vmem [shape: bf16[6,64,64], index: 3, kind: input, shape index: {}]
  %s4 = inlined_call_operand.vmem [shape: f32[8,64], index: 4, kind: input, shape index: {}]
  %s5 = inlined_call_operand.vmem [shape: f32[7,64,1], index: 5, kind: input, shape index: {}]
  %s6 = inlined_call_operand.vmem [shape: f32[8,1], index: 6, kind: input, shape index: {}]
  %s7 = inlined_call_operand.vmem [shape: f32[1,128], index: 7, kind: output, shape index: {}]
  %s8 = sld [smem:[#allocation0]]
  $region38: #{combined_forward.1} parent=0
    _
  %s10 = ssub.s32 1, %s8
  %s11 = scalar_select 0, %s10, %s8
  // Predicated region
  $region2: #{combined_forward.1} parent=0 // pred_check
    _
  $region3: #{combined_forward.1} parent=0 // pred_check_branch
    %13 = sbr.rel (0) target = $region5
  $region4: #{combined_forward.1} parent=0 // pred_region
    _
  $region5: #{combined_forward.1} parent=0 // pred_fallthru
    _
  // Predicated region
  $region6: #{combined_forward.1} parent=0 // pred_check
    _
  $region7: #{combined_forward.1} parent=0 // pred_check_branch
    %15 = sbr.rel (0) target = $region9
  $region8: #{combined_forward.1} parent=0 // pred_region
    _
  $region9: #{combined_forward.1} parent=0 // pred_fallthru
    _
  // Predicated region
  $region10: #{combined_forward.1} parent=0 // pred_check
    _
  $region11: #{combined_forward.1} parent=0 // pred_check_branch
    %17 = sbr.rel (0) target = $region13
  $region12: #{combined_forward.1} parent=0 // pred_region
    _
  $region13: #{combined_forward.1} parent=0 // pred_fallthru
    _
  // Predicated region
  $region14: #{combined_forward.1} parent=0 // pred_check
    _
  $region15: #{combined_forward.1} parent=0 // pred_check_branch
    %19 = sbr.rel (0) target = $region17
  $region16: #{combined_forward.1} parent=0 // pred_region
    _
  $region17: #{combined_forward.1} parent=0 // pred_fallthru
    _
  // Predicated region
  $region18: #{combined_forward.1} parent=0 // pred_check
    _
  $region19: #{combined_forward.1} parent=0 // pred_check_branch
    %21 = sbr.rel (0) target = $region21
  $region20: #{combined_forward.1} parent=0 // pred_region
    _
  $region21: #{combined_forward.1} parent=0 // pred_fallthru
    _
  // Predicated region
  $region22: #{combined_forward.1} parent=0 // pred_check
    _
  $region23: #{combined_forward.1} parent=0 // pred_check_branch
    %23 = sbr.rel (0) target = $region25
  $region24: #{combined_forward.1} parent=0 // pred_region
    _
  $region25: #{combined_forward.1} parent=0 // pred_fallthru
    _
  // Predicated region
  $region26: #{combined_forward.1} parent=0 // pred_check
    _
  $region27: #{combined_forward.1} parent=0 // pred_check_branch
    %25 = sbr.rel (0) target = $region29
  $region28: #{combined_forward.1} parent=0 // pred_region
    _
  $region29: #{combined_forward.1} parent=0 // pred_fallthru
    _
  %v27 = vld [vmem:[%s2] sm:$0xf]
  %v28 = vld [vmem:[%s2 + $0x4] sm:$0xf]
  %v29 = vld [vmem:[%s2 + $0x8] sm:$0xf]
  %v30 = vld [vmem:[%s2 + $0xc] sm:$0xf]
  %v31 = vld [vmem:[%s2 + $0x10] sm:$0xf]
  %v32 = vld [vmem:[%s2 + $0x14] sm:$0xf]
  %v33 = vld [vmem:[%s2 + $0x18] sm:$0xf]
  %v34 = vld [vmem:[%s2 + $0x1c] sm:$0xf]
  %v35 = vld [vmem:[%s0] sm:$0xff]
  %v36 = vld [vmem:[%s0 + $0x8] sm:$0xff]
  %v37 = vld [vmem:[%s0 + $0x10] sm:$0xff]
  %v38 = vld [vmem:[%s0 + $0x18] sm:$0xff]
  %v39 = vpack.c.bf16 %v36, %v35
  %v40 = vpack.c.bf16 %v38, %v37
  %v41 = vld [vmem:[%s5] sm:$0xff]
  %v42 = vld [vmem:[%s5 + $0x8] sm:$0xff]
  %v43 = vld [vmem:[%s5 + $0x10] sm:$0xff]
  %v44 = vld [vmem:[%s5 + $0x18] sm:$0xff]
  %v45 = vld [vmem:[%s5 + $0x20] sm:$0xff]
  %v46 = vld [vmem:[%s5 + $0x28] sm:$0xff]
  %v47 = vld [vmem:[%s5 + $0x30] sm:$0xff]
  %v48 = vld [vmem:[%s5 + $0x38] sm:$0xff]
  %50 = vset.pattern.permute.xlu0 0
  %51 = vperm.xlu0 %50, %v41
  %v52 = vpop.permute.xlu0 %51
  %55 = vset.pattern.permute.xlu0 0
  %56 = vperm.xlu0 %55, %v42
  %v57 = vpop.permute.xlu0 %56
  %60 = vset.pattern.permute.xlu0 0
  %61 = vperm.xlu0 %60, %v43
  %v62 = vpop.permute.xlu0 %61
  %65 = vset.pattern.permute.xlu0 0
  %66 = vperm.xlu0 %65, %v44
  %v67 = vpop.permute.xlu0 %66
  %70 = vset.pattern.permute.xlu0 0
  %71 = vperm.xlu0 %70, %v45
  %v72 = vpop.permute.xlu0 %71
  %75 = vset.pattern.permute.xlu0 0
  %76 = vperm.xlu0 %75, %v46
  %v77 = vpop.permute.xlu0 %76
  %80 = vset.pattern.permute.xlu0 0
  %81 = vperm.xlu0 %80, %v47
  %v82 = vpop.permute.xlu0 %81
  %85 = vset.pattern.permute.xlu0 0
  %86 = vperm.xlu0 %85, %v48
  %v87 = vpop.permute.xlu0 %86
  %v97 = vunpack.c.l.b16 %v27
  %v98 = vunpack.c.l.b16 %v28
  %v99 = vunpack.c.l.b16 %v29
  %v100 = vunpack.c.l.b16 %v30
  %v101 = vunpack.c.l.b16 %v31
  %v102 = vunpack.c.l.b16 %v32
  %v103 = vunpack.c.l.b16 %v33
  %v104 = vunpack.c.l.b16 %v34
  %v105 = vpack.c.b16 %v98, %v97
  %v106 = vpack.c.b16 %v100, %v99
  %v107 = vpack.c.b16 %v102, %v101
  %v108 = vpack.c.b16 %v104, %v103
  %vm109 = vcmask 261120
  %v111 = vsel %vm109, %v105, 0
  %v114 = vsel %vm109, %v106, 0
  %v117 = vsel %vm109, %v107, 0
  %v120 = vsel %vm109, %v108, 0
  %122 = vmatprep.subr.bf16.mxu0 0
  %123 = vmatpush1.bf16.msra.mxu0 %v39
  %124 = vmatprep.subr.bf16.mxu0 0
  %125 = vmatpush1.bf16.msra.mxu0 %v40
  %126 = vmatprep.subr.bf16.mxu0 0
  %127 = vmatpush1.bf16.msra.mxu0 0
  %128 = vmatprep.subr.bf16.mxu0 0
  %129 = vmatpush1.bf16.msra.mxu0 0
  %130 = vmatprep.subr.bf16.mxu0 0
  %131 = vmatpush1.bf16.msra.mxu0 0
  %132 = vmatprep.subr.bf16.mxu0 0
  %133 = vmatpush1.bf16.msra.mxu0 0
  %134 = vmatprep.subr.bf16.mxu0 0
  %135 = vmatpush1.bf16.msra.mxu0 0
  %136 = vmatprep.subr.bf16.mxu0 0
  %137 = vmatpush1.bf16.msra.mxu0 0
  %138 = vmatprep.subr.bf16.mxu0 0
  %139 = vmatpush1.bf16.msra.mxu0 0
  %140 = vmatprep.subr.bf16.mxu0 0
  %141 = vmatpush1.bf16.msra.mxu0 0
  %142 = vmatprep.subr.bf16.mxu0 0
  %143 = vmatpush1.bf16.msra.mxu0 0
  %144 = vmatprep.subr.bf16.mxu0 0
  %145 = vmatpush1.bf16.msra.mxu0 0
  %146 = vmatprep.subr.bf16.mxu0 0
  %147 = vmatpush1.bf16.msra.mxu0 0
  %148 = vmatprep.subr.bf16.mxu0 0
  %149 = vmatpush1.bf16.msra.mxu0 0
  %150 = vmatprep.subr.bf16.mxu0 0
  %151 = vmatpush1.bf16.msra.mxu0 0
  %152 = vmatprep.subr.bf16.mxu0 0
  %153 = vmatpush1.bf16.msra.mxu0 0
  %154 = vmatprep.mubr.bf16.mxu0 0
  %155 = vmatmul.mubr.bf16.gmra.mrb[0].mxu0 %v111
  %v156 = vpop.f32.mrb[0].mxu0
  %v157 = vadd.f32 %v52, %v156
  %v158 = vpop.f32.mrb[0].mxu0
  %v159 = vpop.f32.mrb[0].mxu0
  %v160 = vadd.f32 %v57, %v159
  %v161 = vpop.f32.mrb[0].mxu0
  %162 = vmatprep.mubr.bf16.mxu0 0
  %163 = vmatmul.mubr.bf16.gmra.mrb[0].mxu0 %v114
  %v164 = vpop.f32.mrb[0].mxu0
  %v165 = vadd.f32 %v62, %v164
  %v166 = vpop.f32.mrb[0].mxu0
  %v167 = vpop.f32.mrb[0].mxu0
  %v168 = vadd.f32 %v67, %v167
  %v169 = vpop.f32.mrb[0].mxu0
  %170 = vmatprep.mubr.bf16.mxu0 0
  %171 = vmatmul.mubr.bf16.gmra.mrb[0].mxu0 %v117
  %v172 = vpop.f32.mrb[0].mxu0
  %v173 = vadd.f32 %v72, %v172
  %v174 = vpop.f32.mrb[0].mxu0
  %v175 = vpop.f32.mrb[0].mxu0
  %v176 = vadd.f32 %v77, %v175
  %v177 = vpop.f32.mrb[0].mxu0
  %178 = vmatprep.mubr.bf16.mxu0 0
  %179 = vmatmul.mubr.bf16.gmra.mrb[0].mxu0 %v120
  %v180 = vpop.f32.mrb[0].mxu0
  %v181 = vadd.f32 %v82, %v180
  %v182 = vpop.f32.mrb[0].mxu0
  %v183 = vpop.f32.mrb[0].mxu0
  %v184 = vadd.f32 %v87, %v183
  %v185 = vpop.f32.mrb[0].mxu0
  %186 = vdwg.mxu0
  %vm187 = vcmp.gt.f32.partialorder %v157, 0.0
  %vm188 = vcmp.gt.f32.partialorder %v160, 0.0
  %vm189 = vcmp.gt.f32.partialorder %v165, 0.0
  %vm190 = vcmp.gt.f32.partialorder %v168, 0.0
  %vm191 = vcmp.gt.f32.partialorder %v173, 0.0
  %vm192 = vcmp.gt.f32.partialorder %v176, 0.0
  %vm193 = vcmp.gt.f32.partialorder %v181, 0.0
  %vm194 = vcmp.gt.f32.partialorder %v184, 0.0
  %v195 = vmul.f32 %v157, 0.01
  %v196 = vmul.f32 %v160, 0.01
  %v197 = vmul.f32 %v165, 0.01
  %v198 = vmul.f32 %v168, 0.01
  %v199 = vmul.f32 %v173, 0.01
  %v200 = vmul.f32 %v176, 0.01
  %v201 = vmul.f32 %v181, 0.01
  %v202 = vmul.f32 %v184, 0.01
  %v203 = vsel %vm187, %v157, %v195
  %v204 = vsel %vm188, %v160, %v196
  %v205 = vsel %vm189, %v165, %v197
  %v206 = vsel %vm190, %v168, %v198
  %v207 = vsel %vm191, %v173, %v199
  %v208 = vsel %vm192, %v176, %v200
  %v209 = vsel %vm193, %v181, %v201
  %v210 = vsel %vm194, %v184, %v202
  %v211 = vld [vmem:[%s3] sm:$0xf]
  %v212 = vld [vmem:[%s3 + $0x4] sm:$0xf]
  %v213 = vld [vmem:[%s3 + $0x8] sm:$0xf]
  %v214 = vld [vmem:[%s3 + $0xc] sm:$0xf]
  %v215 = vld [vmem:[%s3 + $0x10] sm:$0xf]
  %v216 = vld [vmem:[%s3 + $0x14] sm:$0xf]
  %v217 = vld [vmem:[%s3 + $0x18] sm:$0xf]
  %v218 = vld [vmem:[%s3 + $0x1c] sm:$0xf]
  %v219 = vpack.c.bf16 %v204, %v203
  %v220 = vpack.c.bf16 %v206, %v205
  %v221 = vpack.c.bf16 %v208, %v207
  %v222 = vpack.c.bf16 %v210, %v209
  %s223 = scalar_lea.vmem %s5, 64
  %v224 = vld [vmem:[%s223] sm:$0xff]
  %v225 = vld [vmem:[%s223 + $0x8] sm:$0xff]
  %v226 = vld [vmem:[%s223 + $0x10] sm:$0xff]
  %v227 = vld [vmem:[%s223 + $0x18] sm:$0xff]
  %v228 = vld [vmem:[%s223 + $0x20] sm:$0xff]
  %v229 = vld [vmem:[%s223 + $0x28] sm:$0xff]
  %v230 = vld [vmem:[%s223 + $0x30] sm:$0xff]
  %v231 = vld [vmem:[%s223 + $0x38] sm:$0xff]
  %233 = vset.pattern.permute.xlu0 0
  %234 = vperm.xlu0 %233, %v224
  %v235 = vpop.permute.xlu0 %234
  %238 = vset.pattern.permute.xlu0 0
  %239 = vperm.xlu0 %238, %v225
  %v240 = vpop.permute.xlu0 %239
  %243 = vset.pattern.permute.xlu0 0
  %244 = vperm.xlu0 %243, %v226
  %v245 = vpop.permute.xlu0 %244
  %248 = vset.pattern.permute.xlu0 0
  %249 = vperm.xlu0 %248, %v227
  %v250 = vpop.permute.xlu0 %249
  %253 = vset.pattern.permute.xlu0 0
  %254 = vperm.xlu0 %253, %v228
  %v255 = vpop.permute.xlu0 %254
  %258 = vset.pattern.permute.xlu0 0
  %259 = vperm.xlu0 %258, %v229
  %v260 = vpop.permute.xlu0 %259
  %263 = vset.pattern.permute.xlu0 0
  %264 = vperm.xlu0 %263, %v230
  %v265 = vpop.permute.xlu0 %264
  %268 = vset.pattern.permute.xlu0 0
  %269 = vperm.xlu0 %268, %v231
  %v270 = vpop.permute.xlu0 %269
  %v280 = vunpack.c.l.b16 %v211
  %v281 = vunpack.c.l.b16 %v212
  %v282 = vunpack.c.l.b16 %v213
  %v283 = vunpack.c.l.b16 %v214
  %v284 = vunpack.c.l.b16 %v215
  %v285 = vunpack.c.l.b16 %v216
  %v286 = vunpack.c.l.b16 %v217
  %v287 = vunpack.c.l.b16 %v218
  %v288 = vpack.c.b16 %v281, %v280
  %v289 = vpack.c.b16 %v283, %v282
  %v290 = vpack.c.b16 %v285, %v284
  %v291 = vpack.c.b16 %v287, %v286
  %vm292 = vcmask 523264
  %v294 = vsel %vm292, %v288, 0
  %v297 = vsel %vm292, %v289, 0
  %v300 = vsel %vm292, %v290, 0
  %v303 = vsel %vm292, %v291, 0
  %305 = vmatprep.subr.bf16.mxu0 0
  %306 = vmatpush1.bf16.msra.mxu0 %v219
  %307 = vmatprep.subr.bf16.mxu0 0
  %308 = vmatpush1.bf16.msra.mxu0 %v220
  %309 = vmatprep.subr.bf16.mxu0 0
  %310 = vmatpush1.bf16.msra.mxu0 %v221
  %311 = vmatprep.subr.bf16.mxu0 0
  %312 = vmatpush1.bf16.msra.mxu0 %v222
  %313 = vmatprep.subr.bf16.mxu0 0
  %314 = vmatpush1.bf16.msra.mxu0 0
  %315 = vmatprep.subr.bf16.mxu0 0
  %316 = vmatpush1.bf16.msra.mxu0 0
  %317 = vmatprep.subr.bf16.mxu0 0
  %318 = vmatpush1.bf16.msra.mxu0 0
  %319 = vmatprep.subr.bf16.mxu0 0
  %320 = vmatpush1.bf16.msra.mxu0 0
  %321 = vmatprep.subr.bf16.mxu0 0
  %322 = vmatpush1.bf16.msra.mxu0 0
  %323 = vmatprep.subr.bf16.mxu0 0
  %324 = vmatpush1.bf16.msra.mxu0 0
  %325 = vmatprep.subr.bf16.mxu0 0
  %326 = vmatpush1.bf16.msra.mxu0 0
  %327 = vmatprep.subr.bf16.mxu0 0
  %328 = vmatpush1.bf16.msra.mxu0 0
  %329 = vmatprep.subr.bf16.mxu0 0
  %330 = vmatpush1.bf16.msra.mxu0 0
  %331 = vmatprep.subr.bf16.mxu0 0
  %332 = vmatpush1.bf16.msra.mxu0 0
  %333 = vmatprep.subr.bf16.mxu0 0
  %334 = vmatpush1.bf16.msra.mxu0 0
  %335 = vmatprep.subr.bf16.mxu0 0
  %336 = vmatpush1.bf16.msra.mxu0 0
  %337 = vmatprep.mubr.bf16.mxu0 0
  %338 = vmatmul.mubr.bf16.gmra.mrb[0].mxu0 %v294
  %v339 = vpop.f32.mrb[0].mxu0
  %v340 = vadd.f32 %v235, %v339
  %v341 = vpop.f32.mrb[0].mxu0
  %v342 = vpop.f32.mrb[0].mxu0
  %v343 = vadd.f32 %v240, %v342
  %v344 = vpop.f32.mrb[0].mxu0
  %345 = vmatprep.mubr.bf16.mxu0 0
  %346 = vmatmul.mubr.bf16.gmra.mrb[0].mxu0 %v297
  %v347 = vpop.f32.mrb[0].mxu0
  %v348 = vadd.f32 %v245, %v347
  %v349 = vpop.f32.mrb[0].mxu0
  %v350 = vpop.f32.mrb[0].mxu0
  %v351 = vadd.f32 %v250, %v350
  %v352 = vpop.f32.mrb[0].mxu0
  %353 = vmatprep.mubr.bf16.mxu0 0
  %354 = vmatmul.mubr.bf16.gmra.mrb[0].mxu0 %v300
  %v355 = vpop.f32.mrb[0].mxu0
  %v356 = vadd.f32 %v255, %v355
  %v357 = vpop.f32.mrb[0].mxu0
  %v358 = vpop.f32.mrb[0].mxu0
  %v359 = vadd.f32 %v260, %v358
  %v360 = vpop.f32.mrb[0].mxu0
  %361 = vmatprep.mubr.bf16.mxu0 0
  %362 = vmatmul.mubr.bf16.gmra.mrb[0].mxu0 %v303
  %v363 = vpop.f32.mrb[0].mxu0
  %v364 = vadd.f32 %v265, %v363
  %v365 = vpop.f32.mrb[0].mxu0
  %v366 = vpop.f32.mrb[0].mxu0
  %v367 = vadd.f32 %v270, %v366
  %v368 = vpop.f32.mrb[0].mxu0
  %369 = vdwg.mxu0
  %vm370 = vcmp.gt.f32.partialorder %v340, 0.0
  %vm371 = vcmp.gt.f32.partialorder %v343, 0.0
  %vm372 = vcmp.gt.f32.partialorder %v348, 0.0
  %vm373 = vcmp.gt.f32.partialorder %v351, 0.0
  %vm374 = vcmp.gt.f32.partialorder %v356, 0.0
  %vm375 = vcmp.gt.f32.partialorder %v359, 0.0
  %vm376 = vcmp.gt.f32.partialorder %v364, 0.0
  %vm377 = vcmp.gt.f32.partialorder %v367, 0.0
  %v378 = vmul.f32 %v340, 0.01
  %v379 = vmul.f32 %v343, 0.01
  %v380 = vmul.f32 %v348, 0.01
  %v381 = vmul.f32 %v351, 0.01
  %v382 = vmul.f32 %v356, 0.01
  %v383 = vmul.f32 %v359, 0.01
  %v384 = vmul.f32 %v364, 0.01
  %v385 = vmul.f32 %v367, 0.01
  %v386 = vsel %vm370, %v340, %v378
  %v387 = vsel %vm371, %v343, %v379
  %v388 = vsel %vm372, %v348, %v380
  %v389 = vsel %vm373, %v351, %v381
  %v390 = vsel %vm374, %v356, %v382
  %v391 = vsel %vm375, %v359, %v383
  %v392 = vsel %vm376, %v364, %v384
  %v393 = vsel %vm377, %v367, %v385
  %s394 = scalar_lea.vmem %s3, 32
  %v395 = vld [vmem:[%s394] sm:$0xf]
  %v396 = vld [vmem:[%s394 + $0x4] sm:$0xf]
  %v397 = vld [vmem:[%s394 + $0x8] sm:$0xf]
  %v398 = vld [vmem:[%s394 + $0xc] sm:$0xf]
  %v399 = vld [vmem:[%s394 + $0x10] sm:$0xf]
  %v400 = vld [vmem:[%s394 + $0x14] sm:$0xf]
  %v401 = vld [vmem:[%s394 + $0x18] sm:$0xf]
  %v402 = vld [vmem:[%s394 + $0x1c] sm:$0xf]
  %v403 = vpack.c.bf16 %v387, %v386
  %v404 = vpack.c.bf16 %v389, %v388
  %v405 = vpack.c.bf16 %v391, %v390
  %v406 = vpack.c.bf16 %v393, %v392
  %s407 = scalar_lea.vmem %s5, 128
  %v408 = vld [vmem:[%s407] sm:$0xff]
  %v409 = vld [vmem:[%s407 + $0x8] sm:$0xff]
  %v410 = vld [vmem:[%s407 + $0x10] sm:$0xff]
  %v411 = vld [vmem:[%s407 + $0x18] sm:$0xff]
  %v412 = vld [vmem:[%s407 + $0x20] sm:$0xff]
  %v413 = vld [vmem:[%s407 + $0x28] sm:$0xff]
  %v414 = vld [vmem:[%s407 + $0x30] sm:$0xff]
  %v415 = vld [vmem:[%s407 + $0x38] sm:$0xff]
  %417 = vset.pattern.permute.xlu0 0
  %418 = vperm.xlu0 %417, %v408
  %v419 = vpop.permute.xlu0 %418
  %422 = vset.pattern.permute.xlu0 0
  %423 = vperm.xlu0 %422, %v409
  %v424 = vpop.permute.xlu0 %423
  %427 = vset.pattern.permute.xlu0 0
  %428 = vperm.xlu0 %427, %v410
  %v429 = vpop.permute.xlu0 %428
  %432 = vset.pattern.permute.xlu0 0
  %433 = vperm.xlu0 %432, %v411
  %v434 = vpop.permute.xlu0 %433
  %437 = vset.pattern.permute.xlu0 0
  %438 = vperm.xlu0 %437, %v412
  %v439 = vpop.permute.xlu0 %438
  %442 = vset.pattern.permute.xlu0 0
  %443 = vperm.xlu0 %442, %v413
  %v444 = vpop.permute.xlu0 %443
  %447 = vset.pattern.permute.xlu0 0
  %448 = vperm.xlu0 %447, %v414
  %v449 = vpop.permute.xlu0 %448
  %452 = vset.pattern.permute.xlu0 0
  %453 = vperm.xlu0 %452, %v415
  %v454 = vpop.permute.xlu0 %453
  %v464 = vunpack.c.l.b16 %v395
  %v465 = vunpack.c.l.b16 %v396
  %v466 = vunpack.c.l.b16 %v397
  %v467 = vunpack.c.l.b16 %v398
  %v468 = vunpack.c.l.b16 %v399
  %v469 = vunpack.c.l.b16 %v400
  %v470 = vunpack.c.l.b16 %v401
  %v471 = vunpack.c.l.b16 %v402
  %v472 = vpack.c.b16 %v465, %v464
  %v473 = vpack.c.b16 %v467, %v466
  %v474 = vpack.c.b16 %v469, %v468
  %v475 = vpack.c.b16 %v471, %v470
  %v477 = vsel %vm292, %v472, 0
  %v480 = vsel %vm292, %v473, 0
  %v483 = vsel %vm292, %v474, 0
  %v486 = vsel %vm292, %v475, 0
  %488 = vmatprep.subr.bf16.mxu0 0
  %489 = vmatpush1.bf16.msra.mxu0 %v403
  %490 = vmatprep.subr.bf16.mxu0 0
  %491 = vmatpush1.bf16.msra.mxu0 %v404
  %492 = vmatprep.subr.bf16.mxu0 0
  %493 = vmatpush1.bf16.msra.mxu0 %v405
  %494 = vmatprep.subr.bf16.mxu0 0
  %495 = vmatpush1.bf16.msra.mxu0 %v406
  %496 = vmatprep.subr.bf16.mxu0 0
  %497 = vmatpush1.bf16.msra.mxu0 0
  %498 = vmatprep.subr.bf16.mxu0 0
  %499 = vmatpush1.bf16.msra.mxu0 0
  %500 = vmatprep.subr.bf16.mxu0 0
  %501 = vmatpush1.bf16.msra.mxu0 0
  %502 = vmatprep.subr.bf16.mxu0 0
  %503 = vmatpush1.bf16.msra.mxu0 0
  %504 = vmatprep.subr.bf16.mxu0 0
  %505 = vmatpush1.bf16.msra.mxu0 0
  %506 = vmatprep.subr.bf16.mxu0 0
  %507 = vmatpush1.bf16.msra.mxu0 0
  %508 = vmatprep.subr.bf16.mxu0 0
  %509 = vmatpush1.bf16.msra.mxu0 0
  %510 = vmatprep.subr.bf16.mxu0 0
  %511 = vmatpush1.bf16.msra.mxu0 0
  %512 = vmatprep.subr.bf16.mxu0 0
  %513 = vmatpush1.bf16.msra.mxu0 0
  %514 = vmatprep.subr.bf16.mxu0 0
  %515 = vmatpush1.bf16.msra.mxu0 0
  %516 = vmatprep.subr.bf16.mxu0 0
  %517 = vmatpush1.bf16.msra.mxu0 0
  %518 = vmatprep.subr.bf16.mxu0 0
  %519 = vmatpush1.bf16.msra.mxu0 0
  %520 = vmatprep.mubr.bf16.mxu0 0
  %521 = vmatmul.mubr.bf16.gmra.mrb[0].mxu0 %v477
  %v522 = vpop.f32.mrb[0].mxu0
  %v523 = vadd.f32 %v419, %v522
  %v524 = vpop.f32.mrb[0].mxu0
  %v525 = vpop.f32.mrb[0].mxu0
  %v526 = vadd.f32 %v424, %v525
  %v527 = vpop.f32.mrb[0].mxu0
  %528 = vmatprep.mubr.bf16.mxu0 0
  %529 = vmatmul.mubr.bf16.gmra.mrb[0].mxu0 %v480
  %v530 = vpop.f32.mrb[0].mxu0
  %v531 = vadd.f32 %v429, %v530
  %v532 = vpop.f32.mrb[0].mxu0
  %v533 = vpop.f32.mrb[0].mxu0
  %v534 = vadd.f32 %v434, %v533
  %v535 = vpop.f32.mrb[0].mxu0
  %536 = vmatprep.mubr.bf16.mxu0 0
  %537 = vmatmul.mubr.bf16.gmra.mrb[0].mxu0 %v483
  %v538 = vpop.f32.mrb[0].mxu0
  %v539 = vadd.f32 %v439, %v538
  %v540 = vpop.f32.mrb[0].mxu0
  %v541 = vpop.f32.mrb[0].mxu0
  %v542 = vadd.f32 %v444, %v541
  %v543 = vpop.f32.mrb[0].mxu0
  %544 = vmatprep.mubr.bf16.mxu0 0
  %545 = vmatmul.mubr.bf16.gmra.mrb[0].mxu0 %v486
  %v546 = vpop.f32.mrb[0].mxu0
  %v547 = vadd.f32 %v449, %v546
  %v548 = vpop.f32.mrb[0].mxu0
  %v549 = vpop.f32.mrb[0].mxu0
  %v550 = vadd.f32 %v454, %v549
  %v551 = vpop.f32.mrb[0].mxu0
  %552 = vdwg.mxu0
  %vm553 = vcmp.gt.f32.partialorder %v523, 0.0
  %vm554 = vcmp.gt.f32.partialorder %v526, 0.0
  %vm555 = vcmp.gt.f32.partialorder %v531, 0.0
  %vm556 = vcmp.gt.f32.partialorder %v534, 0.0
  %vm557 = vcmp.gt.f32.partialorder %v539, 0.0
  %vm558 = vcmp.gt.f32.partialorder %v542, 0.0
  %vm559 = vcmp.gt.f32.partialorder %v547, 0.0
  %vm560 = vcmp.gt.f32.partialorder %v550, 0.0
  %v561 = vmul.f32 %v523, 0.01
  %v562 = vmul.f32 %v526, 0.01
  %v563 = vmul.f32 %v531, 0.01
  %v564 = vmul.f32 %v534, 0.01
  %v565 = vmul.f32 %v539, 0.01
  %v566 = vmul.f32 %v542, 0.01
  %v567 = vmul.f32 %v547, 0.01
  %v568 = vmul.f32 %v550, 0.01
  %v569 = vsel %vm553, %v523, %v561
  %v570 = vsel %vm554, %v526, %v562
  %v571 = vsel %vm555, %v531, %v563
  %v572 = vsel %vm556, %v534, %v564
  %v573 = vsel %vm557, %v539, %v565
  %v574 = vsel %vm558, %v542, %v566
  %v575 = vsel %vm559, %v547, %v567
  %v576 = vsel %vm560, %v550, %v568
  %s577 = scalar_lea.vmem %s3, 64
  %v578 = vld [vmem:[%s577] sm:$0xf]
  %v579 = vld [vmem:[%s577 + $0x4] sm:$0xf]
  %v580 = vld [vmem:[%s577 + $0x8] sm:$0xf]
  %v581 = vld [vmem:[%s577 + $0xc] sm:$0xf]
  %v582 = vld [vmem:[%s577 + $0x10] sm:$0xf]
  %v583 = vld [vmem:[%s577 + $0x14] sm:$0xf]
  %v584 = vld [vmem:[%s577 + $0x18] sm:$0xf]
  %v585 = vld [vmem:[%s577 + $0x1c] sm:$0xf]
  %v586 = vpack.c.bf16 %v570, %v569
  %v587 = vpack.c.bf16 %v572, %v571
  %v588 = vpack.c.bf16 %v574, %v573
  %v589 = vpack.c.bf16 %v576, %v575
  %s590 = scalar_lea.vmem %s5, 192
  %v591 = vld [vmem:[%s590] sm:$0xff]
  %v592 = vld [vmem:[%s590 + $0x8] sm:$0xff]
  %v593 = vld [vmem:[%s590 + $0x10] sm:$0xff]
  %v594 = vld [vmem:[%s590 + $0x18] sm:$0xff]
  %v595 = vld [vmem:[%s590 + $0x20] sm:$0xff]
  %v596 = vld [vmem:[%s590 + $0x28] sm:$0xff]
  %v597 = vld [vmem:[%s590 + $0x30] sm:$0xff]
  %v598 = vld [vmem:[%s590 + $0x38] sm:$0xff]
  %600 = vset.pattern.permute.xlu0 0
  %601 = vperm.xlu0 %600, %v591
  %v602 = vpop.permute.xlu0 %601
  %605 = vset.pattern.permute.xlu0 0
  %606 = vperm.xlu0 %605, %v592
  %v607 = vpop.permute.xlu0 %606
  %610 = vset.pattern.permute.xlu0 0
  %611 = vperm.xlu0 %610, %v593
  %v612 = vpop.permute.xlu0 %611
  %615 = vset.pattern.permute.xlu0 0
  %616 = vperm.xlu0 %615, %v594
  %v617 = vpop.permute.xlu0 %616
  %620 = vset.pattern.permute.xlu0 0
  %621 = vperm.xlu0 %620, %v595
  %v622 = vpop.permute.xlu0 %621
  %625 = vset.pattern.permute.xlu0 0
  %626 = vperm.xlu0 %625, %v596
  %v627 = vpop.permute.xlu0 %626
  %630 = vset.pattern.permute.xlu0 0
  %631 = vperm.xlu0 %630, %v597
  %v632 = vpop.permute.xlu0 %631
  %635 = vset.pattern.permute.xlu0 0
  %636 = vperm.xlu0 %635, %v598
  %v637 = vpop.permute.xlu0 %636
  %v647 = vunpack.c.l.b16 %v578
  %v648 = vunpack.c.l.b16 %v579
  %v649 = vunpack.c.l.b16 %v580
  %v650 = vunpack.c.l.b16 %v581
  %v651 = vunpack.c.l.b16 %v582
  %v652 = vunpack.c.l.b16 %v583
  %v653 = vunpack.c.l.b16 %v584
  %v654 = vunpack.c.l.b16 %v585
  %v655 = vpack.c.b16 %v648, %v647
  %v656 = vpack.c.b16 %v650, %v649
  %v657 = vpack.c.b16 %v652, %v651
  %v658 = vpack.c.b16 %v654, %v653
  %v660 = vsel %vm292, %v655, 0
  %v663 = vsel %vm292, %v656, 0
  %v666 = vsel %vm292, %v657, 0
  %v669 = vsel %vm292, %v658, 0
  %671 = vmatprep.subr.bf16.mxu0 0
  %672 = vmatpush1.bf16.msra.mxu0 %v586
  %673 = vmatprep.subr.bf16.mxu0 0
  %674 = vmatpush1.bf16.msra.mxu0 %v587
  %675 = vmatprep.subr.bf16.mxu0 0
  %676 = vmatpush1.bf16.msra.mxu0 %v588
  %677 = vmatprep.subr.bf16.mxu0 0
  %678 = vmatpush1.bf16.msra.mxu0 %v589
  %679 = vmatprep.subr.bf16.mxu0 0
  %680 = vmatpush1.bf16.msra.mxu0 0
  %681 = vmatprep.subr.bf16.mxu0 0
  %682 = vmatpush1.bf16.msra.mxu0 0
  %683 = vmatprep.subr.bf16.mxu0 0
  %684 = vmatpush1.bf16.msra.mxu0 0
  %685 = vmatprep.subr.bf16.mxu0 0
  %686 = vmatpush1.bf16.msra.mxu0 0
  %687 = vmatprep.subr.bf16.mxu0 0
  %688 = vmatpush1.bf16.msra.mxu0 0
  %689 = vmatprep.subr.bf16.mxu0 0
  %690 = vmatpush1.bf16.msra.mxu0 0
  %691 = vmatprep.subr.bf16.mxu0 0
  %692 = vmatpush1.bf16.msra.mxu0 0
  %693 = vmatprep.subr.bf16.mxu0 0
  %694 = vmatpush1.bf16.msra.mxu0 0
  %695 = vmatprep.subr.bf16.mxu0 0
  %696 = vmatpush1.bf16.msra.mxu0 0
  %697 = vmatprep.subr.bf16.mxu0 0
  %698 = vmatpush1.bf16.msra.mxu0 0
  %699 = vmatprep.subr.bf16.mxu0 0
  %700 = vmatpush1.bf16.msra.mxu0 0
  %701 = vmatprep.subr.bf16.mxu0 0
  %702 = vmatpush1.bf16.msra.mxu0 0
  %703 = vmatprep.mubr.bf16.mxu0 0
  %704 = vmatmul.mubr.bf16.gmra.mrb[0].mxu0 %v660
  %v705 = vpop.f32.mrb[0].mxu0
  %v706 = vadd.f32 %v602, %v705
  %v707 = vpop.f32.mrb[0].mxu0
  %v708 = vpop.f32.mrb[0].mxu0
  %v709 = vadd.f32 %v607, %v708
  %v710 = vpop.f32.mrb[0].mxu0
  %711 = vmatprep.mubr.bf16.mxu0 0
  %712 = vmatmul.mubr.bf16.gmra.mrb[0].mxu0 %v663
  %v713 = vpop.f32.mrb[0].mxu0
  %v714 = vadd.f32 %v612, %v713
  %v715 = vpop.f32.mrb[0].mxu0
  %v716 = vpop.f32.mrb[0].mxu0
  %v717 = vadd.f32 %v617, %v716
  %v718 = vpop.f32.mrb[0].mxu0
  %719 = vmatprep.mubr.bf16.mxu0 0
  %720 = vmatmul.mubr.bf16.gmra.mrb[0].mxu0 %v666
  %v721 = vpop.f32.mrb[0].mxu0
  %v722 = vadd.f32 %v622, %v721
  %v723 = vpop.f32.mrb[0].mxu0
  %v724 = vpop.f32.mrb[0].mxu0
  %v725 = vadd.f32 %v627, %v724
  %v726 = vpop.f32.mrb[0].mxu0
  %727 = vmatprep.mubr.bf16.mxu0 0
  %728 = vmatmul.mubr.bf16.gmra.mrb[0].mxu0 %v669
  %v729 = vpop.f32.mrb[0].mxu0
  %v730 = vadd.f32 %v632, %v729
  %v731 = vpop.f32.mrb[0].mxu0
  %v732 = vpop.f32.mrb[0].mxu0
  %v733 = vadd.f32 %v637, %v732
  %v734 = vpop.f32.mrb[0].mxu0
  %735 = vdwg.mxu0
  %vm736 = vcmp.gt.f32.partialorder %v706, 0.0
  %vm737 = vcmp.gt.f32.partialorder %v709, 0.0
  %vm738 = vcmp.gt.f32.partialorder %v714, 0.0
  %vm739 = vcmp.gt.f32.partialorder %v717, 0.0
  %vm740 = vcmp.gt.f32.partialorder %v722, 0.0
  %vm741 = vcmp.gt.f32.partialorder %v725, 0.0
  %vm742 = vcmp.gt.f32.partialorder %v730, 0.0
  %vm743 = vcmp.gt.f32.partialorder %v733, 0.0
  %v744 = vmul.f32 %v706, 0.01
  %v745 = vmul.f32 %v709, 0.01
  %v746 = vmul.f32 %v714, 0.01
  %v747 = vmul.f32 %v717, 0.01
  %v748 = vmul.f32 %v722, 0.01
  %v749 = vmul.f32 %v725, 0.01
  %v750 = vmul.f32 %v730, 0.01
  %v751 = vmul.f32 %v733, 0.01
  %v752 = vsel %vm736, %v706, %v744
  %v753 = vsel %vm737, %v709, %v745
  %v754 = vsel %vm738, %v714, %v746
  %v755 = vsel %vm739, %v717, %v747
  %v756 = vsel %vm740, %v722, %v748
  %v757 = vsel %vm741, %v725, %v749
  %v758 = vsel %vm742, %v730, %v750
  %v759 = vsel %vm743, %v733, %v751
  %s760 = scalar_lea.vmem %s3, 96
  %v761 = vld [vmem:[%s760] sm:$0xf]
  %v762 = vld [vmem:[%s760 + $0x4] sm:$0xf]
  %v763 = vld [vmem:[%s760 + $0x8] sm:$0xf]
  %v764 = vld [vmem:[%s760 + $0xc] sm:$0xf]
  %v765 = vld [vmem:[%s760 + $0x10] sm:$0xf]
  %v766 = vld [vmem:[%s760 + $0x14] sm:$0xf]
  %v767 = vld [vmem:[%s760 + $0x18] sm:$0xf]
  %v768 = vld [vmem:[%s760 + $0x1c] sm:$0xf]
  %v769 = vpack.c.bf16 %v753, %v752
  %v770 = vpack.c.bf16 %v755, %v754
  %v771 = vpack.c.bf16 %v757, %v756
  %v772 = vpack.c.bf16 %v759, %v758
  %s773 = scalar_lea.vmem %s5, 256
  %v774 = vld [vmem:[%s773] sm:$0xff]
  %v775 = vld [vmem:[%s773 + $0x8] sm:$0xff]
  %v776 = vld [vmem:[%s773 + $0x10] sm:$0xff]
  %v777 = vld [vmem:[%s773 + $0x18] sm:$0xff]
  %v778 = vld [vmem:[%s773 + $0x20] sm:$0xff]
  %v779 = vld [vmem:[%s773 + $0x28] sm:$0xff]
  %v780 = vld [vmem:[%s773 + $0x30] sm:$0xff]
  %v781 = vld [vmem:[%s773 + $0x38] sm:$0xff]
  %783 = vset.pattern.permute.xlu0 0
  %784 = vperm.xlu0 %783, %v774
  %v785 = vpop.permute.xlu0 %784
  %788 = vset.pattern.permute.xlu0 0
  %789 = vperm.xlu0 %788, %v775
  %v790 = vpop.permute.xlu0 %789
  %793 = vset.pattern.permute.xlu0 0
  %794 = vperm.xlu0 %793, %v776
  %v795 = vpop.permute.xlu0 %794
  %798 = vset.pattern.permute.xlu0 0
  %799 = vperm.xlu0 %798, %v777
  %v800 = vpop.permute.xlu0 %799
  %803 = vset.pattern.permute.xlu0 0
  %804 = vperm.xlu0 %803, %v778
  %v805 = vpop.permute.xlu0 %804
  %808 = vset.pattern.permute.xlu0 0
  %809 = vperm.xlu0 %808, %v779
  %v810 = vpop.permute.xlu0 %809
  %813 = vset.pattern.permute.xlu0 0
  %814 = vperm.xlu0 %813, %v780
  %v815 = vpop.permute.xlu0 %814
  %818 = vset.pattern.permute.xlu0 0
  %819 = vperm.xlu0 %818, %v781
  %v820 = vpop.permute.xlu0 %819
  %v830 = vunpack.c.l.b16 %v761
  %v831 = vunpack.c.l.b16 %v762
  %v832 = vunpack.c.l.b16 %v763
  %v833 = vunpack.c.l.b16 %v764
  %v834 = vunpack.c.l.b16 %v765
  %v835 = vunpack.c.l.b16 %v766
  %v836 = vunpack.c.l.b16 %v767
  %v837 = vunpack.c.l.b16 %v768
  %v838 = vpack.c.b16 %v831, %v830
  %v839 = vpack.c.b16 %v833, %v832
  %v840 = vpack.c.b16 %v835, %v834
  %v841 = vpack.c.b16 %v837, %v836
  %v843 = vsel %vm292, %v838, 0
  %v846 = vsel %vm292, %v839, 0
  %v849 = vsel %vm292, %v840, 0
  %v852 = vsel %vm292, %v841, 0
  %854 = vmatprep.subr.bf16.mxu0 0
  %855 = vmatpush1.bf16.msra.mxu0 %v769
  %856 = vmatprep.subr.bf16.mxu0 0
  %857 = vmatpush1.bf16.msra.mxu0 %v770
  %858 = vmatprep.subr.bf16.mxu0 0
  %859 = vmatpush1.bf16.msra.mxu0 %v771
  %860 = vmatprep.subr.bf16.mxu0 0
  %861 = vmatpush1.bf16.msra.mxu0 %v772
  %862 = vmatprep.subr.bf16.mxu0 0
  %863 = vmatpush1.bf16.msra.mxu0 0
  %864 = vmatprep.subr.bf16.mxu0 0
  %865 = vmatpush1.bf16.msra.mxu0 0
  %866 = vmatprep.subr.bf16.mxu0 0
  %867 = vmatpush1.bf16.msra.mxu0 0
  %868 = vmatprep.subr.bf16.mxu0 0
  %869 = vmatpush1.bf16.msra.mxu0 0
  %870 = vmatprep.subr.bf16.mxu0 0
  %871 = vmatpush1.bf16.msra.mxu0 0
  %872 = vmatprep.subr.bf16.mxu0 0
  %873 = vmatpush1.bf16.msra.mxu0 0
  %874 = vmatprep.subr.bf16.mxu0 0
  %875 = vmatpush1.bf16.msra.mxu0 0
  %876 = vmatprep.subr.bf16.mxu0 0
  %877 = vmatpush1.bf16.msra.mxu0 0
  %878 = vmatprep.subr.bf16.mxu0 0
  %879 = vmatpush1.bf16.msra.mxu0 0
  %880 = vmatprep.subr.bf16.mxu0 0
  %881 = vmatpush1.bf16.msra.mxu0 0
  %882 = vmatprep.subr.bf16.mxu0 0
  %883 = vmatpush1.bf16.msra.mxu0 0
  %884 = vmatprep.subr.bf16.mxu0 0
  %885 = vmatpush1.bf16.msra.mxu0 0
  %886 = vmatprep.mubr.bf16.mxu0 0
  %887 = vmatmul.mubr.bf16.gmra.mrb[0].mxu0 %v843
  %v888 = vpop.f32.mrb[0].mxu0
  %v889 = vadd.f32 %v785, %v888
  %v890 = vpop.f32.mrb[0].mxu0
  %v891 = vpop.f32.mrb[0].mxu0
  %v892 = vadd.f32 %v790, %v891
  %v893 = vpop.f32.mrb[0].mxu0
  %894 = vmatprep.mubr.bf16.mxu0 0
  %895 = vmatmul.mubr.bf16.gmra.mrb[0].mxu0 %v846
  %v896 = vpop.f32.mrb[0].mxu0
  %v897 = vadd.f32 %v795, %v896
  %v898 = vpop.f32.mrb[0].mxu0
  %v899 = vpop.f32.mrb[0].mxu0
  %v900 = vadd.f32 %v800, %v899
  %v901 = vpop.f32.mrb[0].mxu0
  %902 = vmatprep.mubr.bf16.mxu0 0
  %903 = vmatmul.mubr.bf16.gmra.mrb[0].mxu0 %v849
  %v904 = vpop.f32.mrb[0].mxu0
  %v905 = vadd.f32 %v805, %v904
  %v906 = vpop.f32.mrb[0].mxu0
  %v907 = vpop.f32.mrb[0].mxu0
  %v908 = vadd.f32 %v810, %v907
  %v909 = vpop.f32.mrb[0].mxu0
  %910 = vmatprep.mubr.bf16.mxu0 0
  %911 = vmatmul.mubr.bf16.gmra.mrb[0].mxu0 %v852
  %v912 = vpop.f32.mrb[0].mxu0
  %v913 = vadd.f32 %v815, %v912
  %v914 = vpop.f32.mrb[0].mxu0
  %v915 = vpop.f32.mrb[0].mxu0
  %v916 = vadd.f32 %v820, %v915
  %v917 = vpop.f32.mrb[0].mxu0
  %918 = vdwg.mxu0
  %vm919 = vcmp.gt.f32.partialorder %v889, 0.0
  %vm920 = vcmp.gt.f32.partialorder %v892, 0.0
  %vm921 = vcmp.gt.f32.partialorder %v897, 0.0
  %vm922 = vcmp.gt.f32.partialorder %v900, 0.0
  %vm923 = vcmp.gt.f32.partialorder %v905, 0.0
  %vm924 = vcmp.gt.f32.partialorder %v908, 0.0
  %vm925 = vcmp.gt.f32.partialorder %v913, 0.0
  %vm926 = vcmp.gt.f32.partialorder %v916, 0.0
  %v927 = vmul.f32 %v889, 0.01
  %v928 = vmul.f32 %v892, 0.01
  %v929 = vmul.f32 %v897, 0.01
  %v930 = vmul.f32 %v900, 0.01
  %v931 = vmul.f32 %v905, 0.01
  %v932 = vmul.f32 %v908, 0.01
  %v933 = vmul.f32 %v913, 0.01
  %v934 = vmul.f32 %v916, 0.01
  %v935 = vsel %vm919, %v889, %v927
  %v936 = vsel %vm920, %v892, %v928
  %v937 = vsel %vm921, %v897, %v929
  %v938 = vsel %vm922, %v900, %v930
  %v939 = vsel %vm923, %v905, %v931
  %v940 = vsel %vm924, %v908, %v932
  %v941 = vsel %vm925, %v913, %v933
  %v942 = vsel %vm926, %v916, %v934
  %s943 = scalar_lea.vmem %s3, 128
  %v944 = vld [vmem:[%s943] sm:$0xf]
  %v945 = vld [vmem:[%s943 + $0x4] sm:$0xf]
  %v946 = vld [vmem:[%s943 + $0x8] sm:$0xf]
  %v947 = vld [vmem:[%s943 + $0xc] sm:$0xf]
  %v948 = vld [vmem:[%s943 + $0x10] sm:$0xf]
  %v949 = vld [vmem:[%s943 + $0x14] sm:$0xf]
  %v950 = vld [vmem:[%s943 + $0x18] sm:$0xf]
  %v951 = vld [vmem:[%s943 + $0x1c] sm:$0xf]
  %v952 = vpack.c.bf16 %v936, %v935
  %v953 = vpack.c.bf16 %v938, %v937
  %v954 = vpack.c.bf16 %v940, %v939
  %v955 = vpack.c.bf16 %v942, %v941
  %s956 = scalar_lea.vmem %s5, 320
  %v957 = vld [vmem:[%s956] sm:$0xff]
  %v958 = vld [vmem:[%s956 + $0x8] sm:$0xff]
  %v959 = vld [vmem:[%s956 + $0x10] sm:$0xff]
  %v960 = vld [vmem:[%s956 + $0x18] sm:$0xff]
  %v961 = vld [vmem:[%s956 + $0x20] sm:$0xff]
  %v962 = vld [vmem:[%s956 + $0x28] sm:$0xff]
  %v963 = vld [vmem:[%s956 + $0x30] sm:$0xff]
  %v964 = vld [vmem:[%s956 + $0x38] sm:$0xff]
  %966 = vset.pattern.permute.xlu0 0
  %967 = vperm.xlu0 %966, %v957
  %v968 = vpop.permute.xlu0 %967
  %971 = vset.pattern.permute.xlu0 0
  %972 = vperm.xlu0 %971, %v958
  %v973 = vpop.permute.xlu0 %972
  %976 = vset.pattern.permute.xlu0 0
  %977 = vperm.xlu0 %976, %v959
  %v978 = vpop.permute.xlu0 %977
  %981 = vset.pattern.permute.xlu0 0
  %982 = vperm.xlu0 %981, %v960
  %v983 = vpop.permute.xlu0 %982
  %986 = vset.pattern.permute.xlu0 0
  %987 = vperm.xlu0 %986, %v961
  %v988 = vpop.permute.xlu0 %987
  %991 = vset.pattern.permute.xlu0 0
  %992 = vperm.xlu0 %991, %v962
  %v993 = vpop.permute.xlu0 %992
  %996 = vset.pattern.permute.xlu0 0
  %997 = vperm.xlu0 %996, %v963
  %v998 = vpop.permute.xlu0 %997
  %1001 = vset.pattern.permute.xlu0 0
  %1002 = vperm.xlu0 %1001, %v964
  %v1003 = vpop.permute.xlu0 %1002
  %v1013 = vunpack.c.l.b16 %v944
  %v1014 = vunpack.c.l.b16 %v945
  %v1015 = vunpack.c.l.b16 %v946
  %v1016 = vunpack.c.l.b16 %v947
  %v1017 = vunpack.c.l.b16 %v948
  %v1018 = vunpack.c.l.b16 %v949
  %v1019 = vunpack.c.l.b16 %v950
  %v1020 = vunpack.c.l.b16 %v951
  %v1021 = vpack.c.b16 %v1014, %v1013
  %v1022 = vpack.c.b16 %v1016, %v1015
  %v1023 = vpack.c.b16 %v1018, %v1017
  %v1024 = vpack.c.b16 %v1020, %v1019
  %v1026 = vsel %vm292, %v1021, 0
  %v1029 = vsel %vm292, %v1022, 0
  %v1032 = vsel %vm292, %v1023, 0
  %v1035 = vsel %vm292, %v1024, 0
  %1037 = vmatprep.subr.bf16.mxu0 0
  %1038 = vmatpush1.bf16.msra.mxu0 %v952
  %1039 = vmatprep.subr.bf16.mxu0 0
  %1040 = vmatpush1.bf16.msra.mxu0 %v953
  %1041 = vmatprep.subr.bf16.mxu0 0
  %1042 = vmatpush1.bf16.msra.mxu0 %v954
  %1043 = vmatprep.subr.bf16.mxu0 0
  %1044 = vmatpush1.bf16.msra.mxu0 %v955
  %1045 = vmatprep.subr.bf16.mxu0 0
  %1046 = vmatpush1.bf16.msra.mxu0 0
  %1047 = vmatprep.subr.bf16.mxu0 0
  %1048 = vmatpush1.bf16.msra.mxu0 0
  %1049 = vmatprep.subr.bf16.mxu0 0
  %1050 = vmatpush1.bf16.msra.mxu0 0
  %1051 = vmatprep.subr.bf16.mxu0 0
  %1052 = vmatpush1.bf16.msra.mxu0 0
  %1053 = vmatprep.subr.bf16.mxu0 0
  %1054 = vmatpush1.bf16.msra.mxu0 0
  %1055 = vmatprep.subr.bf16.mxu0 0
  %1056 = vmatpush1.bf16.msra.mxu0 0
  %1057 = vmatprep.subr.bf16.mxu0 0
  %1058 = vmatpush1.bf16.msra.mxu0 0
  %1059 = vmatprep.subr.bf16.mxu0 0
  %1060 = vmatpush1.bf16.msra.mxu0 0
  %1061 = vmatprep.subr.bf16.mxu0 0
  %1062 = vmatpush1.bf16.msra.mxu0 0
  %1063 = vmatprep.subr.bf16.mxu0 0
  %1064 = vmatpush1.bf16.msra.mxu0 0
  %1065 = vmatprep.subr.bf16.mxu0 0
  %1066 = vmatpush1.bf16.msra.mxu0 0
  %1067 = vmatprep.subr.bf16.mxu0 0
  %1068 = vmatpush1.bf16.msra.mxu0 0
  %1069 = vmatprep.mubr.bf16.mxu0 0
  %1070 = vmatmul.mubr.bf16.gmra.mrb[0].mxu0 %v1026
  %v1071 = vpop.f32.mrb[0].mxu0
  %v1072 = vadd.f32 %v968, %v1071
  %v1073 = vpop.f32.mrb[0].mxu0
  %v1074 = vpop.f32.mrb[0].mxu0
  %v1075 = vadd.f32 %v973, %v1074
  %v1076 = vpop.f32.mrb[0].mxu0
  %1077 = vmatprep.mubr.bf16.mxu0 0
  %1078 = vmatmul.mubr.bf16.gmra.mrb[0].mxu0 %v1029
  %v1079 = vpop.f32.mrb[0].mxu0
  %v1080 = vadd.f32 %v978, %v1079
  %v1081 = vpop.f32.mrb[0].mxu0
  %v1082 = vpop.f32.mrb[0].mxu0
  %v1083 = vadd.f32 %v983, %v1082
  %v1084 = vpop.f32.mrb[0].mxu0
  %1085 = vmatprep.mubr.bf16.mxu0 0
  %1086 = vmatmul.mubr.bf16.gmra.mrb[0].mxu0 %v1032
  %v1087 = vpop.f32.mrb[0].mxu0
  %v1088 = vadd.f32 %v988, %v1087
  %v1089 = vpop.f32.mrb[0].mxu0
  %v1090 = vpop.f32.mrb[0].mxu0
  %v1091 = vadd.f32 %v993, %v1090
  %v1092 = vpop.f32.mrb[0].mxu0
  %1093 = vmatprep.mubr.bf16.mxu0 0
  %1094 = vmatmul.mubr.bf16.gmra.mrb[0].mxu0 %v1035
  %v1095 = vpop.f32.mrb[0].mxu0
  %v1096 = vadd.f32 %v998, %v1095
  %v1097 = vpop.f32.mrb[0].mxu0
  %v1098 = vpop.f32.mrb[0].mxu0
  %v1099 = vadd.f32 %v1003, %v1098
  %v1100 = vpop.f32.mrb[0].mxu0
  %1101 = vdwg.mxu0
  %vm1102 = vcmp.gt.f32.partialorder %v1072, 0.0
  %vm1103 = vcmp.gt.f32.partialorder %v1075, 0.0
  %vm1104 = vcmp.gt.f32.partialorder %v1080, 0.0
  %vm1105 = vcmp.gt.f32.partialorder %v1083, 0.0
  %vm1106 = vcmp.gt.f32.partialorder %v1088, 0.0
  %vm1107 = vcmp.gt.f32.partialorder %v1091, 0.0
  %vm1108 = vcmp.gt.f32.partialorder %v1096, 0.0
  %vm1109 = vcmp.gt.f32.partialorder %v1099, 0.0
  %v1110 = vmul.f32 %v1072, 0.01
  %v1111 = vmul.f32 %v1075, 0.01
  %v1112 = vmul.f32 %v1080, 0.01
  %v1113 = vmul.f32 %v1083, 0.01
  %v1114 = vmul.f32 %v1088, 0.01
  %v1115 = vmul.f32 %v1091, 0.01
  %v1116 = vmul.f32 %v1096, 0.01
  %v1117 = vmul.f32 %v1099, 0.01
  %v1118 = vsel %vm1102, %v1072, %v1110
  %v1119 = vsel %vm1103, %v1075, %v1111
  %v1120 = vsel %vm1104, %v1080, %v1112
  %v1121 = vsel %vm1105, %v1083, %v1113
  %v1122 = vsel %vm1106, %v1088, %v1114
  %v1123 = vsel %vm1107, %v1091, %v1115
  %v1124 = vsel %vm1108, %v1096, %v1116
  %v1125 = vsel %vm1109, %v1099, %v1117
  %s1126 = scalar_lea.vmem %s3, 160
  %v1127 = vld [vmem:[%s1126] sm:$0xf]
  %v1128 = vld [vmem:[%s1126 + $0x4] sm:$0xf]
  %v1129 = vld [vmem:[%s1126 + $0x8] sm:$0xf]
  %v1130 = vld [vmem:[%s1126 + $0xc] sm:$0xf]
  %v1131 = vld [vmem:[%s1126 + $0x10] sm:$0xf]
  %v1132 = vld [vmem:[%s1126 + $0x14] sm:$0xf]
  %v1133 = vld [vmem:[%s1126 + $0x18] sm:$0xf]
  %v1134 = vld [vmem:[%s1126 + $0x1c] sm:$0xf]
  %v1135 = vpack.c.bf16 %v1119, %v1118
  %v1136 = vpack.c.bf16 %v1121, %v1120
  %v1137 = vpack.c.bf16 %v1123, %v1122
  %v1138 = vpack.c.bf16 %v1125, %v1124
  %s1139 = scalar_lea.vmem %s5, 384
  %v1140 = vld [vmem:[%s1139] sm:$0xff]
  %v1141 = vld [vmem:[%s1139 + $0x8] sm:$0xff]
  %v1142 = vld [vmem:[%s1139 + $0x10] sm:$0xff]
  %v1143 = vld [vmem:[%s1139 + $0x18] sm:$0xff]
  %v1144 = vld [vmem:[%s1139 + $0x20] sm:$0xff]
  %v1145 = vld [vmem:[%s1139 + $0x28] sm:$0xff]
  %v1146 = vld [vmem:[%s1139 + $0x30] sm:$0xff]
  %v1147 = vld [vmem:[%s1139 + $0x38] sm:$0xff]
  %1149 = vset.pattern.permute.xlu0 0
  %1150 = vperm.xlu0 %1149, %v1140
  %v1151 = vpop.permute.xlu0 %1150
  %1154 = vset.pattern.permute.xlu0 0
  %1155 = vperm.xlu0 %1154, %v1141
  %v1156 = vpop.permute.xlu0 %1155
  %1159 = vset.pattern.permute.xlu0 0
  %1160 = vperm.xlu0 %1159, %v1142
  %v1161 = vpop.permute.xlu0 %1160
  %1164 = vset.pattern.permute.xlu0 0
  %1165 = vperm.xlu0 %1164, %v1143
  %v1166 = vpop.permute.xlu0 %1165
  %1169 = vset.pattern.permute.xlu0 0
  %1170 = vperm.xlu0 %1169, %v1144
  %v1171 = vpop.permute.xlu0 %1170
  %1174 = vset.pattern.permute.xlu0 0
  %1175 = vperm.xlu0 %1174, %v1145
  %v1176 = vpop.permute.xlu0 %1175
  %1179 = vset.pattern.permute.xlu0 0
  %1180 = vperm.xlu0 %1179, %v1146
  %v1181 = vpop.permute.xlu0 %1180
  %1184 = vset.pattern.permute.xlu0 0
  %1185 = vperm.xlu0 %1184, %v1147
  %v1186 = vpop.permute.xlu0 %1185
  %v1196 = vunpack.c.l.b16 %v1127
  %v1197 = vunpack.c.l.b16 %v1128
  %v1198 = vunpack.c.l.b16 %v1129
  %v1199 = vunpack.c.l.b16 %v1130
  %v1200 = vunpack.c.l.b16 %v1131
  %v1201 = vunpack.c.l.b16 %v1132
  %v1202 = vunpack.c.l.b16 %v1133
  %v1203 = vunpack.c.l.b16 %v1134
  %v1204 = vpack.c.b16 %v1197, %v1196
  %v1205 = vpack.c.b16 %v1199, %v1198
  %v1206 = vpack.c.b16 %v1201, %v1200
  %v1207 = vpack.c.b16 %v1203, %v1202
  %v1209 = vsel %vm292, %v1204, 0
  %v1212 = vsel %vm292, %v1205, 0
  %v1215 = vsel %vm292, %v1206, 0
  %v1218 = vsel %vm292, %v1207, 0
  %1220 = vmatprep.subr.bf16.mxu0 0
  %1221 = vmatpush1.bf16.msra.mxu0 %v1135
  %1222 = vmatprep.subr.bf16.mxu0 0
  %1223 = vmatpush1.bf16.msra.mxu0 %v1136
  %1224 = vmatprep.subr.bf16.mxu0 0
  %1225 = vmatpush1.bf16.msra.mxu0 %v1137
  %1226 = vmatprep.subr.bf16.mxu0 0
  %1227 = vmatpush1.bf16.msra.mxu0 %v1138
  %1228 = vmatprep.subr.bf16.mxu0 0
  %1229 = vmatpush1.bf16.msra.mxu0 0
  %1230 = vmatprep.subr.bf16.mxu0 0
  %1231 = vmatpush1.bf16.msra.mxu0 0
  %1232 = vmatprep.subr.bf16.mxu0 0
  %1233 = vmatpush1.bf16.msra.mxu0 0
  %1234 = vmatprep.subr.bf16.mxu0 0
  %1235 = vmatpush1.bf16.msra.mxu0 0
  %1236 = vmatprep.subr.bf16.mxu0 0
  %1237 = vmatpush1.bf16.msra.mxu0 0
  %1238 = vmatprep.subr.bf16.mxu0 0
  %1239 = vmatpush1.bf16.msra.mxu0 0
  %1240 = vmatprep.subr.bf16.mxu0 0
  %1241 = vmatpush1.bf16.msra.mxu0 0
  %1242 = vmatprep.subr.bf16.mxu0 0
  %1243 = vmatpush1.bf16.msra.mxu0 0
  %1244 = vmatprep.subr.bf16.mxu0 0
  %1245 = vmatpush1.bf16.msra.mxu0 0
  %1246 = vmatprep.subr.bf16.mxu0 0
  %1247 = vmatpush1.bf16.msra.mxu0 0
  %1248 = vmatprep.subr.bf16.mxu0 0
  %1249 = vmatpush1.bf16.msra.mxu0 0
  %1250 = vmatprep.subr.bf16.mxu0 0
  %1251 = vmatpush1.bf16.msra.mxu0 0
  %1252 = vmatprep.mubr.bf16.mxu0 0
  %1253 = vmatmul.mubr.bf16.gmra.mrb[0].mxu0 %v1209
  %v1254 = vpop.f32.mrb[0].mxu0
  %v1255 = vadd.f32 %v1151, %v1254
  %v1256 = vpop.f32.mrb[0].mxu0
  %v1257 = vpop.f32.mrb[0].mxu0
  %v1258 = vadd.f32 %v1156, %v1257
  %v1259 = vpop.f32.mrb[0].mxu0
  %1260 = vmatprep.mubr.bf16.mxu0 0
  %1261 = vmatmul.mubr.bf16.gmra.mrb[0].mxu0 %v1212
  %v1262 = vpop.f32.mrb[0].mxu0
  %v1263 = vadd.f32 %v1161, %v1262
  %v1264 = vpop.f32.mrb[0].mxu0
  %v1265 = vpop.f32.mrb[0].mxu0
  %v1266 = vadd.f32 %v1166, %v1265
  %v1267 = vpop.f32.mrb[0].mxu0
  %1268 = vmatprep.mubr.bf16.mxu0 0
  %1269 = vmatmul.mubr.bf16.gmra.mrb[0].mxu0 %v1215
  %v1270 = vpop.f32.mrb[0].mxu0
  %v1271 = vadd.f32 %v1171, %v1270
  %v1272 = vpop.f32.mrb[0].mxu0
  %v1273 = vpop.f32.mrb[0].mxu0
  %v1274 = vadd.f32 %v1176, %v1273
  %v1275 = vpop.f32.mrb[0].mxu0
  %1276 = vmatprep.mubr.bf16.mxu0 0
  %1277 = vmatmul.mubr.bf16.gmra.mrb[0].mxu0 %v1218
  %v1278 = vpop.f32.mrb[0].mxu0
  %v1279 = vadd.f32 %v1181, %v1278
  %v1280 = vpop.f32.mrb[0].mxu0
  %v1281 = vpop.f32.mrb[0].mxu0
  %v1282 = vadd.f32 %v1186, %v1281
  %v1283 = vpop.f32.mrb[0].mxu0
  %1284 = vdwg.mxu0
  %vm1285 = vcmp.gt.f32.partialorder %v1255, 0.0
  %vm1286 = vcmp.gt.f32.partialorder %v1258, 0.0
  %vm1287 = vcmp.gt.f32.partialorder %v1263, 0.0
  %vm1288 = vcmp.gt.f32.partialorder %v1266, 0.0
  %vm1289 = vcmp.gt.f32.partialorder %v1271, 0.0
  %vm1290 = vcmp.gt.f32.partialorder %v1274, 0.0
  %vm1291 = vcmp.gt.f32.partialorder %v1279, 0.0
  %vm1292 = vcmp.gt.f32.partialorder %v1282, 0.0
  %v1293 = vmul.f32 %v1255, 0.01
  %v1294 = vmul.f32 %v1258, 0.01
  %v1295 = vmul.f32 %v1263, 0.01
  %v1296 = vmul.f32 %v1266, 0.01
  %v1297 = vmul.f32 %v1271, 0.01
  %v1298 = vmul.f32 %v1274, 0.01
  %v1299 = vmul.f32 %v1279, 0.01
  %v1300 = vmul.f32 %v1282, 0.01
  %v1301 = vsel %vm1285, %v1255, %v1293
  %v1302 = vsel %vm1286, %v1258, %v1294
  %v1303 = vsel %vm1287, %v1263, %v1295
  %v1304 = vsel %vm1288, %v1266, %v1296
  %v1305 = vsel %vm1289, %v1271, %v1297
  %v1306 = vsel %vm1290, %v1274, %v1298
  %v1307 = vsel %vm1291, %v1279, %v1299
  %v1308 = vsel %vm1292, %v1282, %v1300
  %v1309 = vld [vmem:[%s4] sm:$0xff]
  %v1310 = vld [vmem:[%s6] sm:$0xff]
  %1312 = vset.pattern.permute.xlu0 0
  %1313 = vperm.xlu0 %1312, %v1310
  %v1314 = vpop.permute.xlu0 %1313
  %v1317 = vsel %vm292, %v1309, 0
  %1319 = vmatprep.subr.mxu0 0.0
  %1320 = vmatpush1.msra.mxu0 %v1301
  %1321 = vmatprep.subr.mxu0 0.0
  %1322 = vmatpush1.msra.mxu0 %v1302
  %1323 = vmatprep.subr.mxu0 0.0
  %1324 = vmatpush1.msra.mxu0 %v1303
  %1325 = vmatprep.subr.mxu0 0.0
  %1326 = vmatpush1.msra.mxu0 %v1304
  %1327 = vmatprep.subr.mxu0 0.0
  %1328 = vmatpush1.msra.mxu0 %v1305
  %1329 = vmatprep.subr.mxu0 0.0
  %1330 = vmatpush1.msra.mxu0 %v1306
  %1331 = vmatprep.subr.mxu0 0.0
  %1332 = vmatpush1.msra.mxu0 %v1307
  %1333 = vmatprep.subr.mxu0 0.0
  %1334 = vmatpush1.msra.mxu0 %v1308
  %1335 = vmatprep.subr.mxu0 0.0
  %1336 = vmatpush1.msra.mxu0 0.0
  %1337 = vmatprep.subr.mxu0 0.0
  %1338 = vmatpush1.msra.mxu0 0.0
  %1339 = vmatprep.subr.mxu0 0.0
  %1340 = vmatpush1.msra.mxu0 0.0
  %1341 = vmatprep.subr.mxu0 0.0
  %1342 = vmatpush1.msra.mxu0 0.0
  %1343 = vmatprep.subr.mxu0 0.0
  %1344 = vmatpush1.msra.mxu0 0.0
  %1345 = vmatprep.subr.mxu0 0.0
  %1346 = vmatpush1.msra.mxu0 0.0
  %1347 = vmatprep.subr.mxu0 0.0
  %1348 = vmatpush1.msra.mxu0 0.0
  %1349 = vmatprep.subr.mxu0 0.0
  %1350 = vmatpush1.msra.mxu0 0.0
  %1351 = vmatprep.subr.mxu0 0.0
  %1352 = vmatpush1.msra.mxu0 0.0
  %1353 = vmatprep.subr.mxu0 0.0
  %1354 = vmatpush1.msra.mxu0 0.0
  %1355 = vmatprep.subr.mxu0 0.0
  %1356 = vmatpush1.msra.mxu0 0.0
  %1357 = vmatprep.subr.mxu0 0.0
  %1358 = vmatpush1.msra.mxu0 0.0
  %1359 = vmatprep.subr.mxu0 0.0
  %1360 = vmatpush1.msra.mxu0 0.0
  %1361 = vmatprep.subr.mxu0 0.0
  %1362 = vmatpush1.msra.mxu0 0.0
  %1363 = vmatprep.subr.mxu0 0.0
  %1364 = vmatpush1.msra.mxu0 0.0
  %1365 = vmatprep.subr.mxu0 0.0
  %1366 = vmatpush1.msra.mxu0 0.0
  %1367 = vmatprep.subr.mxu0 0.0
  %1368 = vmatpush1.msra.mxu0 0.0
  %1369 = vmatprep.subr.mxu0 0.0
  %1370 = vmatpush1.msra.mxu0 0.0
  %1371 = vmatprep.subr.mxu0 0.0
  %1372 = vmatpush1.msra.mxu0 0.0
  %1373 = vmatprep.subr.mxu0 0.0
  %1374 = vmatpush1.msra.mxu0 0.0
  %1375 = vmatprep.subr.mxu0 0.0
  %1376 = vmatpush1.msra.mxu0 0.0
  %1377 = vmatprep.subr.mxu0 0.0
  %1378 = vmatpush1.msra.mxu0 0.0
  %1379 = vmatprep.subr.mxu0 0.0
  %1380 = vmatpush1.msra.mxu0 0.0
  %1381 = vmatprep.subr.mxu0 0.0
  %1382 = vmatpush1.msra.mxu0 0.0
  %1383 = vmatprep.mubr.f32.mxu0 0.0
  %1384 = vmatmul.mubr.f32.gmra.mrb[0].mxu0 %v1317
  %v1385 = vpop.f32.mrb[0].mxu0
  %v1386 = vadd.f32 %v1314, %v1385
  %v1387 = vpop.f32.mrb[0].mxu0
  %1388 = vdwg.mxu0
  %v1389 = vmax.f32 %v1386, 1e-10
  %v1390 = vld [vmem:[%s1] sm:$0x1]
  %v1393 = vunpack.c.l.s4 1966171168
  %v1394 = vunpack.c.0.s8 %v1393
  %v1395 = vlaneseq
  %v1396 = vshrl.u32 %v1395, 7
  %v1397 = vsub.s32 %v1394, %v1396
  %v1398 = vrot.slane %v1389, %v1397
  %v1399 = vcombine.high %v1398, %v1398
  %v1401 = vunpack.c.l.s4 1966171168
  %v1402 = vunpack.c.0.s8 %v1401
  %v1403 = vlaneseq
  %v1404 = vshrl.u32 %v1403, 7
  %v1405 = vsub.s32 %v1402, %v1404
  %v1406 = vrot.slane %v1399, %v1405
  %v1408 = vpow.f32 %v1390, %v1406
  %v1409 = vmul.f32 %v1386, %v1408
  %1410 = vst [vmem:[%s7] sm:$0x1] %v1409
  // Predicated region
  $region30: #{combined_forward.1} parent=0 // pred_check
    _
  $region31: #{combined_forward.1} parent=0 // pred_check_branch
    %1412 = sbr.rel (0) target = $region33
  $region32: #{combined_forward.1} parent=0 // pred_region
    _
  $region33: #{combined_forward.1} parent=0 // pred_fallthru
    _
  // Predicated region
  $region34: #{combined_forward.1} parent=0 // pred_check
    _
  $region35: #{combined_forward.1} parent=0 // pred_check_branch
    %1414 = sbr.rel (0) target = $region37
  $region36: #{combined_forward.1} parent=0 // pred_region
    _
  $region37: #{combined_forward.1} parent=0 // pred_fallthru
    _

</llo_original>
